<compile_context>
chip_gen: v5e
topology: v5e:2x2
jax: 0.10.0
libtpu: 0.0.40
codegen_flags: <defaults>
</compile_context>

<pallas_src>
import functools

import numpy as np

import jax
import jax.numpy as jnp
from jax.experimental import pallas as pl
from jax.experimental.pallas import tpu as pltpu

EPS = 1e-5                 # nn.BatchNorm2d default eps
LANE = 128
TK_TARGET = 512            # conv contraction tile target
_MIN_TILE_ROWS = 64
FIN_BUDGET = 24 * 1024 * 1024   # double-buffered VMEM budget for finalize blocks


def _round_up(x, m):
    return (x + m - 1) // m * m


def _tpu_vmem_capacity():
    cap = 128 * 1024 * 1024
    try:
        cap = int(getattr(pltpu.get_tpu_info(), "vmem_capacity_bytes", cap))
    except Exception:
        pass
    return cap


_VMEM_CAP = _tpu_vmem_capacity()
# Keep scoped VMEM well under physical (v7x has only 64 MiB per core).
VMEM_LIMIT = int(min(_VMEM_CAP * 3 // 4, 96 * 1024 * 1024))
# Larger conv M tiles on 128-MiB-VMEM chips (v5e/v6e), conservative on v7x.
TM_TARGET = 512 if _VMEM_CAP >= 96 * 1024 * 1024 else 256


# ----------------------------- Pallas kernels ------------------------------ #

def _conv_stats_kernel(p_ref, w_ref, y_ref, stats_ref):
    """(TM, TK) @ (TK, Cpad) accumulating directly into the resident output
    block; at the last K step also emit per-tile per-channel sum / sum-of-
    squares partials (rows 0/1 of an 8-row stats slab)."""
    k = pl.program_id(1)

    @pl.when(k == 0)
    def _():
        y_ref[...] = jnp.zeros_like(y_ref)

    y_ref[...] += jnp.dot(p_ref[...], w_ref[...],
                          preferred_element_type=jnp.float32)

    @pl.when(k == pl.num_programs(1) - 1)
    def _():
        y = y_ref[...]
        s = jnp.sum(y, axis=0, keepdims=True)
        sq = jnp.sum(y * y, axis=0, keepdims=True)
        pad = jnp.zeros((6, y.shape[1]), jnp.float32)
        stats_ref[...] = jnp.concatenate([s, sq, pad], axis=0)[None]


def _conv_sc_stats_kernel(p_ref, w_ref, xs_ref, wsc_ref,
                          y_ref, stats_ref, ysc_ref, scstats_ref):
    """Same as _conv_stats_kernel plus the 1x1 projection-shortcut matmul and
    its stats fused into the same M grid (computed once at k == 0; blocks stay
    resident across the K loop)."""
    k = pl.program_id(1)

    @pl.when(k == 0)
    def _():
        y_ref[...] = jnp.zeros_like(y_ref)
        ysc = jnp.dot(xs_ref[...], wsc_ref[...],
                      preferred_element_type=jnp.float32)
        ysc_ref[...] = ysc
        s = jnp.sum(ysc, axis=0, keepdims=True)
        sq = jnp.sum(ysc * ysc, axis=0, keepdims=True)
        pad = jnp.zeros((6, ysc.shape[1]), jnp.float32)
        scstats_ref[...] = jnp.concatenate([s, sq, pad], axis=0)[None]

    y_ref[...] += jnp.dot(p_ref[...], w_ref[...],
                          preferred_element_type=jnp.float32)

    @pl.when(k == pl.num_programs(1) - 1)
    def _():
        y = y_ref[...]
        s = jnp.sum(y, axis=0, keepdims=True)
        sq = jnp.sum(y * y, axis=0, keepdims=True)
        pad = jnp.zeros((6, y.shape[1]), jnp.float32)
        stats_ref[...] = jnp.concatenate([s, sq, pad], axis=0)[None]


def _bn_relu_kernel(y_ref, s_ref, t_ref, o_ref):
    o_ref[...] = jnp.maximum(y_ref[...] * s_ref[...] + t_ref[...],
                             0.0).astype(o_ref.dtype)


def _bn_add_affine_relu_kernel(y_ref, s_ref, t_ref, r_ref, rs_ref, rt_ref, o_ref):
    y = y_ref[...] * s_ref[...] + t_ref[...]
    r = r_ref[...] * rs_ref[...] + rt_ref[...]
    o_ref[...] = jnp.maximum(y + r, 0.0).astype(o_ref.dtype)


def _bn_add_raw_relu_kernel(y_ref, s_ref, t_ref, r_ref, o_ref):
    """Identity-shortcut finalize: no affine applied to the residual."""
    y = y_ref[...] * s_ref[...] + t_ref[...]
    o_ref[...] = jnp.maximum(y + r_ref[...], 0.0).astype(o_ref.dtype)


# ------------------------------ tiling helpers ------------------------------ #

def _tile_m(m):
    """Conv M tile; guarantees >=2 tiles whenever M allows so the 'parallel'
    axis can be split across v7x's two TensorCores."""
    if m > 2 * TM_TARGET:
        return TM_TARGET
    if m >= 2 * _MIN_TILE_ROWS:
        return _round_up(-(-m // 2), 16)
    return _round_up(max(m, 16), 16)


def _tile_k(k):
    """Contraction tiling with minimal zero padding (tk in multiples of 128
    chosen so the last K block is mostly real columns)."""
    k_lane = _round_up(k, LANE)
    num_k = -(-k_lane // TK_TARGET)
    tk = _round_up(-(-k_lane // num_k), LANE)
    return tk * num_k, tk, num_k


def _finalize_grouping(tm, num_m, c_pad, n_streams):
    """Group conv M tiles into larger streaming blocks for the elementwise
    finalize kernels (bigger blocks -> closer to HBM roofline), under a
    conservative double-buffered VMEM budget (safe on v7x's 64 MiB)."""
    best = 1
    for g in range(1, num_m + 1):
        if num_m % g != 0:
            continue
        if tm * g * c_pad * 4 * 2 * n_streams <= FIN_BUDGET:
            best = g
    return best


# ------------------------------ kernel wrappers ----------------------------- #

def conv_pre_bn(patches, w_mat, *, shortcut=None):
    """Tiled bf16 matmul (conv-as-matmul) producing the pre-BN output plus
    per-M-tile per-channel sum / sum-of-squares partials.

    patches : (M, K) bf16  -- im2col rows (n, ho, wo) x cols (kh, kw, cin)
    w_mat   : (K, C) f32
    shortcut: optional (xs, wsc) with xs (M, Cin) bf16 and wsc (Cin, C) f32;
              the 1x1 projection shortcut is fused into the same kernel.
    """
    m, k = patches.shape
    c = w_mat.shape[1]
    c_pad = _round_up(c, LANE)
    tm = _tile_m(m)
    m_pad = _round_up(m, tm)
    num_m = m_pad // tm
    k_pad, tk, num_k = _tile_k(k)

    # Single-shot pads of the already-bf16 operands (no extra cast pass).
    p = jnp.pad(patches, ((0, m_pad - m), (0, k_pad - k)))
    w = jnp.pad(w_mat.astype(jnp.bfloat16), ((0, k_pad - k), (0, c_pad - c)))

    in_specs = [
        pl.BlockSpec((tm, tk), lambda i, kk: (i, kk)),
        pl.BlockSpec((tk, c_pad), lambda i, kk: (kk, 0)),
    ]
    out_shape = [jax.ShapeDtypeStruct((m_pad, c_pad), jnp.float32),
                 jax.ShapeDtypeStruct((num_m, 8, c_pad), jnp.float32)]
    out_specs = [pl.BlockSpec((tm, c_pad), lambda i, kk: (i, 0)),
                 pl.BlockSpec((1, 8, c_pad), lambda i, kk: (i, 0, 0))]
    args = [p, w]
    kernel = _conv_stats_kernel
    flops = 2 * m_pad * k_pad * c_pad
    bytes_acc = (p.size * 2 + w.size * 2 * num_m
                 + m_pad * c_pad * 4 + num_m * 8 * c_pad * 4)

    if shortcut is not None:
        xs, wsc = shortcut
        cin = xs.shape[1]
        cin_pad = _round_up(cin, LANE)
        xs_p = jnp.pad(xs, ((0, m_pad - m), (0, cin_pad - cin)))
        wsc_p = jnp.pad(wsc.astype(jnp.bfloat16),
                        ((0, cin_pad - cin), (0, c_pad - c)))
        in_specs += [pl.BlockSpec((tm, cin_pad), lambda i, kk: (i, 0)),
                     pl.BlockSpec((cin_pad, c_pad), lambda i, kk: (0, 0))]
        out_shape += [jax.ShapeDtypeStruct((m_pad, c_pad), jnp.float32),
                      jax.ShapeDtypeStruct((num_m, 8, c_pad), jnp.float32)]
        out_specs += [pl.BlockSpec((tm, c_pad), lambda i, kk: (i, 0)),
                      pl.BlockSpec((1, 8, c_pad), lambda i, kk: (i, 0, 0))]
        args += [xs_p, wsc_p]
        kernel = _conv_sc_stats_kernel
        flops += 2 * m_pad * cin_pad * c_pad
        bytes_acc += (xs_p.size * 2 + wsc_p.size * 2
                      + m_pad * c_pad * 4 + num_m * 8 * c_pad * 4)

    outs = pl.pallas_call(
        kernel,
        out_shape=tuple(out_shape),
        grid_spec=pltpu.PrefetchScalarGridSpec(
            num_scalar_prefetch=0,
            grid=(num_m, num_k),
            in_specs=in_specs,
            out_specs=out_specs),
        compiler_params=pltpu.CompilerParams(
            dimension_semantics=("parallel", "arbitrary"),
            vmem_limit_bytes=VMEM_LIMIT),
        cost_estimate=pl.CostEstimate(flops=flops, transcendentals=0,
                                      bytes_accessed=bytes_acc),
    )(*args)

    tile_rows = np.minimum(tm, m - tm * np.arange(num_m)).astype(np.float32)
    meta = dict(m=m, c=c, tm=tm, m_pad=m_pad, num_m=num_m, c_pad=c_pad,
                tile_rows=tile_rows)
    if shortcut is not None:
        y, stats, ysc, scstats = outs
        return y, stats, ysc, scstats, meta
    y, stats = outs
    return y, stats, meta


def bn_affine(stats, tile_rows, gamma, beta, c_pad):
    """Fold full-batch BN statistics into a per-channel scale/shift (f32).

    Per-M-tile (sum, sumsq) partials are merged with Chan's parallel algorithm
    (per-tile mean-shifted M2) rather than global E[x^2]-E[x]^2, avoiding
    catastrophic cancellation at large M.
    NOTE: gamma/beta are zero-padded to c_pad, so the padded output channels
    get scale == shift == 0 (they are sliced away afterwards anyway).
    """
    s = stats[:, 0, :]                                   # (num_m, c_pad)
    sq = stats[:, 1, :]
    n_i = jnp.asarray(tile_rows, jnp.float32).reshape(-1, 1)
    n = jnp.sum(n_i)
    mean_i = s / n_i
    m2_i = sq - s * mean_i                               # per-tile sum((x-mean_i)^2)
    mean = jnp.sum(s, axis=0) / n
    m2 = jnp.sum(m2_i, axis=0) + jnp.sum(n_i * jnp.square(mean_i - mean), axis=0)
    var = jnp.maximum(m2 / n, 0.0)                       # biased (training-mode) var
    inv = jax.lax.rsqrt(var + EPS)
    g = jnp.zeros((c_pad,), jnp.float32).at[:gamma.shape[0]].set(gamma)
    b = jnp.zeros((c_pad,), jnp.float32).at[:beta.shape[0]].set(beta)
    scale = g * inv
    shift = b - mean * scale
    return scale.reshape(1, c_pad), shift.reshape(1, c_pad)


def bn_relu(y_pad, scale, shift, *, tm, num_m, out_dtype=jnp.bfloat16):
    m_pad, c_pad = y_pad.shape
    g = _finalize_grouping(tm, num_m, c_pad, n_streams=2)
    rows = tm * g
    out_bytes = jnp.dtype(out_dtype).itemsize
    cost = pl.CostEstimate(flops=2 * m_pad * c_pad, transcendentals=0,
                           bytes_accessed=m_pad * c_pad * (4 + out_bytes))
    return pl.pallas_call(
        _bn_relu_kernel,
        out_shape=jax.ShapeDtypeStruct((m_pad, c_pad), out_dtype),
        grid_spec=pltpu.PrefetchScalarGridSpec(
            num_scalar_prefetch=0,
            grid=(m_pad // rows,),
            in_specs=[pl.BlockSpec((rows, c_pad), lambda i: (i, 0)),
                      pl.BlockSpec((1, c_pad), lambda i: (0, 0)),
                      pl.BlockSpec((1, c_pad), lambda i: (0, 0))],
            out_specs=pl.BlockSpec((rows, c_pad), lambda i: (i, 0))),
        compiler_params=pltpu.CompilerParams(
            dimension_semantics=("parallel",),
            vmem_limit_bytes=VMEM_LIMIT),
        cost_estimate=cost,
    )(y_pad, scale, shift)


def bn_add_relu(y_pad, scale, shift, res_pad, res_affine, *, tm, num_m,
                out_dtype=jnp.float32):
    """bn2 + residual add + relu.  res_affine=(rs, rt) for the projection
    shortcut, or None for the identity shortcut (raw residual, no affine)."""
    m_pad, c_pad = y_pad.shape
    g = _finalize_grouping(tm, num_m, c_pad, n_streams=3)
    rows = tm * g
    big = pl.BlockSpec((rows, c_pad), lambda i: (i, 0))
    vec = pl.BlockSpec((1, c_pad), lambda i: (0, 0))
    if res_affine is not None:
        rs, rt = res_affine
        kernel = _bn_add_affine_relu_kernel
        in_specs = [big, vec, vec, big, vec, vec]
        args = (y_pad, scale, shift, res_pad, rs, rt)
    else:
        kernel = _bn_add_raw_relu_kernel
        in_specs = [big, vec, vec, big]
        args = (y_pad, scale, shift, res_pad)
    out_bytes = jnp.dtype(out_dtype).itemsize
    cost = pl.CostEstimate(flops=5 * m_pad * c_pad, transcendentals=0,
                           bytes_accessed=m_pad * c_pad * (8 + out_bytes))
    return pl.pallas_call(
        kernel,
        out_shape=jax.ShapeDtypeStruct((m_pad, c_pad), out_dtype),
        grid_spec=pltpu.PrefetchScalarGridSpec(
            num_scalar_prefetch=0,
            grid=(m_pad // rows,),
            in_specs=in_specs,
            out_specs=big),
        compiler_params=pltpu.CompilerParams(
            dimension_semantics=("parallel",),
            vmem_limit_bytes=VMEM_LIMIT),
        cost_estimate=cost,
    )(*args)


# ------------------------------- JAX glue ---------------------------------- #

def _im2col(x_nhwc, k, stride, pad):
    """Patch matrix built directly in the input dtype (bf16 for conv operands):
    rows = (n, ho, wo) row-major; cols = (kh, kw, cin)."""
    n, h, w, c = x_nhwc.shape
    xp = jnp.pad(x_nhwc, ((0, 0), (pad, pad), (pad, pad), (0, 0)))
    ho = (h + 2 * pad - k) // stride + 1
    wo = (w + 2 * pad - k) // stride + 1
    cols = []
    for dh in range(k):
        for dw in range(k):
            cols.append(xp[:, dh:dh + stride * ho:stride,
                           dw:dw + stride * wo:stride, :])
    patches = jnp.concatenate(cols, axis=-1)            # [N, Ho, Wo, k*k*C]
    return patches.reshape(n * ho * wo, k * k * c), ho, wo


def _w_oihw_to_mat(w_oihw):
    """[Cout, Cin, kh, kw] -> [kh*kw*Cin, Cout] (matches im2col column order)."""
    cout = w_oihw.shape[0]
    return jnp.transpose(w_oihw, (2, 3, 1, 0)).reshape(-1, cout)


def basic_block_forward(x_nchw, params, stride):
    x = jnp.transpose(x_nchw, (0, 2, 3, 1)).astype(jnp.float32)   # NHWC f32
    x_bf = x.astype(jnp.bfloat16)
    n, h, w, cin = x.shape
    planes = params["w1"].shape[0]
    projection = (stride != 1) or (cin != planes)

    # conv1 (3x3, stride, pad=1) + bn1 + relu -> bf16 out1
    p1, ho, wo = _im2col(x_bf, 3, stride, 1)
    y1, st1, m1 = conv_pre_bn(p1, _w_oihw_to_mat(params["w1"]))
    sc1, sh1 = bn_affine(st1, m1["tile_rows"], params["g1"], params["b1"],
                         m1["c_pad"])
    out1_pad = bn_relu(y1, sc1, sh1, tm=m1["tm"], num_m=m1["num_m"])
    out1 = out1_pad[:m1["m"], :planes].reshape(n, ho, wo, planes)   # bf16

    # conv2 (3x3, stride=1, pad=1) pre-BN + stats, with the 1x1 projection
    # shortcut fused into the same kernel when present.
    p2, _, _ = _im2col(out1, 3, 1, 1)
    w2_mat = _w_oihw_to_mat(params["w2"])
    if projection:
        xs = x_bf[:, ::stride, ::stride, :].reshape(n * ho * wo, cin)
        y2, st2, ysc, stsc, m2 = conv_pre_bn(
            p2, w2_mat, shortcut=(xs, _w_oihw_to_mat(params["wsc"])))
        sc2, sh2 = bn_affine(st2, m2["tile_rows"], params["g2"], params["b2"],
                             m2["c_pad"])
        rs, rt = bn_affine(stsc, m2["tile_rows"], params["gsc"], params["bsc"],
                           m2["c_pad"])
        out_pad = bn_add_relu(y2, sc2, sh2, ysc, (rs, rt),
                              tm=m2["tm"], num_m=m2["num_m"])
    else:
        y2, st2, m2 = conv_pre_bn(p2, w2_mat)
        sc2, sh2 = bn_affine(st2, m2["tile_rows"], params["g2"], params["b2"],
                             m2["c_pad"])
        res = jnp.pad(x.reshape(n * h * w, cin),
                      ((0, m2["m_pad"] - m2["m"]), (0, m2["c_pad"] - cin)))
        out_pad = bn_add_relu(y2, sc2, sh2, res, None,
                              tm=m2["tm"], num_m=m2["num_m"])

    out = out_pad[:m2["m"], :planes].reshape(n, ho, wo, planes)
    return jnp.transpose(out, (0, 3, 1, 2))                        # back to NCHW


# ---------------------------- pure-JAX reference ---------------------------- #

def _ref_conv(x, w, stride, pad, conv_dtype):
    return jax.lax.conv_general_dilated(
        x.astype(conv_dtype), w.astype(conv_dtype),
        (stride, stride), ((pad, pad), (pad, pad)),
        dimension_numbers=("NCHW", "OIHW", "NCHW"),
        preferred_element_type=jnp.float32)


def _ref_bn(x, g, b):
    mean = jnp.mean(x, axis=(0, 2, 3), keepdims=True)
    var = jnp.mean(jnp.square(x - mean), axis=(0, 2, 3), keepdims=True)
    return ((x - mean) * jax.lax.rsqrt(var + EPS)
            * g.reshape(1, -1, 1, 1) + b.reshape(1, -1, 1, 1))


def basic_block_ref(x, params, stride, conv_dtype=jnp.float32):
    cin = x.shape[1]
    planes = params["w1"].shape[0]
    out = jax.nn.relu(_ref_bn(_ref_conv(x, params["w1"], stride, 1, conv_dtype),
                              params["g1"], params["b1"]))
    out = _ref_bn(_ref_conv(out, params["w2"], 1, 1, conv_dtype),
                  params["g2"], params["b2"])
    if stride != 1 or cin != planes:
        sc = _ref_bn(_ref_conv(x, params["wsc"], stride, 0, conv_dtype),
                     params["gsc"], params["bsc"])
    else:
        sc = x
    return jax.nn.relu(out + sc)


# ---------------------------------- main ------------------------------------ #

def _make_params(key, in_planes, planes, projection):
    ks = jax.random.split(key, 10)
    params = {
        "w1": 0.1 * jax.random.normal(ks[0], (planes, in_planes, 3, 3), jnp.float32),
        "g1": 1.0 + 0.1 * jax.random.normal(ks[1], (planes,), jnp.float32),
        "b1": 0.1 * jax.random.normal(ks[2], (planes,), jnp.float32),
        "w2": 0.1 * jax.random.normal(ks[3], (planes, planes, 3, 3), jnp.float32),
        "g2": 1.0 + 0.1 * jax.random.normal(ks[4], (planes,), jnp.float32),
        "b2": 0.1 * jax.random.normal(ks[5], (planes,), jnp.float32),
    }
    if projection:
        params["wsc"] = 0.1 * jax.random.normal(
            ks[6], (planes, in_planes, 1, 1), jnp.float32)
        params["gsc"] = 1.0 + 0.1 * jax.random.normal(ks[7], (planes,), jnp.float32)
        params["bsc"] = 0.1 * jax.random.normal(ks[8], (planes,), jnp.float32)
    return params


if __name__ == "__main__":
    key = jax.random.PRNGKey(0)
    configs = [
        # (N, in_planes, planes, H, W, stride)
        (2, 4, 8, 16, 16, 2),    # projection shortcut (fused 1x1 conv path)
        (2, 8, 8, 16, 16, 1),    # identity shortcut (raw-residual path)
    ]
    for idx, (N, cin, planes, H, W, stride) in enumerate(configs):
        kp, kx, key = jax.random.split(key, 3)
        projection = (stride != 1) or (cin != planes)
        params = _make_params(kp, cin, planes, projection)
        x = jax.random.normal(kx, (N, cin, H, W), jnp.float32)

        fwd = jax.jit(functools.partial(basic_block_forward, stride=stride))
        out = jax.block_until_ready(fwd(x, params))

        # bf16-matmul reference (same mixed precision as the kernel) + f32 sanity.
        ref_bf16 = basic_block_ref(x, params, stride, conv_dtype=jnp.bfloat16)
        ref_f32 = basic_block_ref(x, params, stride, conv_dtype=jnp.float32)

        Ho = (H + 2 - 3) // stride + 1
        assert out.shape == ref_f32.shape == (N, planes, Ho, Ho)
        assert jnp.allclose(out, ref_bf16, atol=2e-2, rtol=2e-2), \
            f"config {idx}: mismatch vs bf16-matmul JAX reference"
        assert jnp.allclose(out, ref_f32, atol=6e-2, rtol=6e-2), \
            f"config {idx}: mismatch vs f32 JAX reference"

    print("KERNEL_OK")
</pallas_src>

<mosaic_0001>
module attributes {stable_mosaic.version = 11 : i64} {
  func.func @_conv_stats_kernel(%arg0: i32, %arg1: i32, %arg2: memref<64x128xbf16, #tpu.memory_space<vmem>>, %arg3: memref<128x128xbf16, #tpu.memory_space<vmem>>, %arg4: memref<64x128xf32, #tpu.memory_space<vmem>>, %arg5: memref<1x8x128xf32, #tpu.memory_space<vmem>>) attributes {dimension_semantics = [#tpu.dimension_semantics<parallel>, #tpu.dimension_semantics<arbitrary>], iteration_bounds = array<i64: 2, 1>, scalar_prefetch = 0 : i64, scratch_operands = 0 : i64, tpu.core_type = #tpu.core_type<tc>, window_params = [{transform_indices = @transform_0, window_bounds = array<i64: 64, 128>}, {transform_indices = @transform_1, window_bounds = array<i64: 128, 128>}, {transform_indices = @transform_2, window_bounds = array<i64: 64, 128>}, {transform_indices = @transform_3, window_bounds = array<i64: 1, 8, 128>}]} {
    %c0_i32 = arith.constant 0 : i32
    %0 = arith.cmpi eq, %arg1, %c0_i32 : i32
    %1 = arith.extui %0 : i1 to i32
    %c0_i32_0 = arith.constant 0 : i32
    %2 = arith.cmpi ne, %1, %c0_i32_0 : i32
    scf.if %2 {
      %cst_10 = arith.constant 0.000000e+00 : f32
      %12 = vector.broadcast %cst_10 : f32 to vector<64x128xf32>
      %c0_11 = arith.constant 0 : index
      %c0_12 = arith.constant 0 : index
      %13 = vector.load %arg4[%c0_11, %c0_12] : memref<64x128xf32, #tpu.memory_space<vmem>>, vector<64x128xf32>
      tpu.vector_store %arg4[%c0_11, %c0_12], %12 {strides = array<i32>} : memref<64x128xf32, #tpu.memory_space<vmem>>, vector<64x128xf32>,
    } else {
    }
    %c0 = arith.constant 0 : index
    %c0_1 = arith.constant 0 : index
    %3 = vector.load %arg4[%c0, %c0_1] : memref<64x128xf32, #tpu.memory_space<vmem>>, vector<64x128xf32>
    %c0_2 = arith.constant 0 : index
    %c0_3 = arith.constant 0 : index
    %4 = vector.load %arg2[%c0_2, %c0_3] : memref<64x128xbf16, #tpu.memory_space<vmem>>, vector<64x128xbf16>
    %c0_4 = arith.constant 0 : index
    %c0_5 = arith.constant 0 : index
    %5 = vector.load %arg3[%c0_4, %c0_5] : memref<128x128xbf16, #tpu.memory_space<vmem>>, vector<128x128xbf16>
    %cst = arith.constant dense<0.000000e+00> : vector<64x128xf32>
    %6 = tpu.matmul %4, %5, %cst {dimension_numbers = #tpu.dot_dimension_numbers<[1], [0], [0], [1], [0, 0, 1, 1], [], []>} : vector<64x128xbf16>, vector<128x128xbf16>, vector<64x128xf32> -> vector<64x128xf32>
    %7 = arith.addf %3, %6 : vector<64x128xf32>
    %c0_6 = arith.constant 0 : index
    %c0_7 = arith.constant 0 : index
    %8 = vector.load %arg4[%c0_6, %c0_7] : memref<64x128xf32, #tpu.memory_space<vmem>>, vector<64x128xf32>
    tpu.vector_store %arg4[%c0_6, %c0_7], %7 {strides = array<i32>} : memref<64x128xf32, #tpu.memory_space<vmem>>, vector<64x128xf32>,
    %c0_i32_8 = arith.constant 0 : i32
    %9 = arith.cmpi eq, %arg1, %c0_i32_8 : i32
    %10 = arith.extui %9 : i1 to i32
    %c0_i32_9 = arith.constant 0 : i32
    %11 = arith.cmpi ne, %10, %c0_i32_9 : i32
    scf.if %11 {
      %c0_10 = arith.constant 0 : index
      %c0_11 = arith.constant 0 : index
      %12 = vector.load %arg4[%c0_10, %c0_11] : memref<64x128xf32, #tpu.memory_space<vmem>>, vector<64x128xf32>
      %cst_12 = arith.constant dense<0.000000e+00> : vector<128xf32>
      %13 = vector.multi_reduction <add>, %12, %cst_12 [0] : vector<64x128xf32> to vector<128xf32>
      %14 = vector.shape_cast %13 : vector<128xf32> to vector<1x128xf32>
      %15 = arith.mulf %12, %12 : vector<64x128xf32>
      %cst_13 = arith.constant dense<0.000000e+00> : vector<128xf32>
      %16 = vector.multi_reduction <add>, %15, %cst_13 [0] : vector<64x128xf32> to vector<128xf32>
      %17 = vector.shape_cast %16 : vector<128xf32> to vector<1x128xf32>
      %cst_14 = arith.constant 0.000000e+00 : f32
      %18 = vector.broadcast %cst_14 : f32 to vector<6x128xf32>
      %19 = tpu.concatenate %14, %17, %18 in 0 : vector<1x128xf32>, vector<1x128xf32>, vector<6x128xf32> -> vector<8x128xf32>
      %20 = vector.shape_cast %19 : vector<8x128xf32> to vector<1x8x128xf32>
      %c0_15 = arith.constant 0 : index
      %c0_16 = arith.constant 0 : index
      %c0_17 = arith.constant 0 : index
      %21 = vector.load %arg5[%c0_15, %c0_16, %c0_17] : memref<1x8x128xf32, #tpu.memory_space<vmem>>, vector<1x8x128xf32>
      tpu.vector_store %arg5[%c0_15, %c0_16, %c0_17], %20 {strides = array<i32>} : memref<1x8x128xf32, #tpu.memory_space<vmem>>, vector<1x8x128xf32>,
    } else {
    }
    return
  }
  func.func @transform_0(%arg0: i32, %arg1: i32) -> (i32, i32) {
    %c0_i32 = arith.constant 0 : i32
    return %arg0, %arg1 : i32, i32
  }
  func.func @transform_1(%arg0: i32, %arg1: i32) -> (i32, i32) {
    %c0_i32 = arith.constant 0 : i32
    %c0_i32_0 = arith.constant 0 : i32
    return %arg1, %c0_i32 : i32, i32
  }
  func.func @transform_2(%arg0: i32, %arg1: i32) -> (i32, i32) {
    %c0_i32 = arith.constant 0 : i32
    %c0_i32_0 = arith.constant 0 : i32
    return %arg0, %c0_i32 : i32, i32
  }
  func.func @transform_3(%arg0: i32, %arg1: i32) -> (i32, i32, i32) {
    %c0_i32 = arith.constant 0 : i32
    %c0_i32_0 = arith.constant 0 : i32
    %c0_i32_1 = arith.constant 0 : i32
    return %arg0, %c0_i32, %c0_i32_0 : i32, i32, i32
  }
}

module attributes {stable_mosaic.version = 11 : i64} {
  func.func @_bn_relu_kernel(%arg0: i32, %arg1: memref<128x128xf32, #tpu.memory_space<vmem>>, %arg2: memref<1x128xf32, #tpu.memory_space<vmem>>, %arg3: memref<1x128xf32, #tpu.memory_space<vmem>>, %arg4: memref<128x128xbf16, #tpu.memory_space<vmem>>) attributes {dimension_semantics = [#tpu.dimension_semantics<parallel>], iteration_bounds = array<i64: 1>, scalar_prefetch = 0 : i64, scratch_operands = 0 : i64, tpu.core_type = #tpu.core_type<tc>, window_params = [{transform_indices = @transform_0, window_bounds = array<i64: 128, 128>}, {pipeline_mode = #tpu.pipeline_mode<synchronous>, transform_indices = @transform_1, window_bounds = array<i64: 1, 128>}, {pipeline_mode = #tpu.pipeline_mode<synchronous>, transform_indices = @transform_2, window_bounds = array<i64: 1, 128>}, {transform_indices = @transform_3, window_bounds = array<i64: 128, 128>}]} {
    %c0 = arith.constant 0 : index
    %c0_0 = arith.constant 0 : index
    %0 = vector.load %arg1[%c0, %c0_0] : memref<128x128xf32, #tpu.memory_space<vmem>>, vector<128x128xf32>
    %c0_1 = arith.constant 0 : index
    %c0_2 = arith.constant 0 : index
    %1 = vector.load %arg2[%c0_1, %c0_2] : memref<1x128xf32, #tpu.memory_space<vmem>>, vector<1x128xf32>
    %2 = vector.broadcast %1 : vector<1x128xf32> to vector<128x128xf32>
    %3 = arith.mulf %0, %2 : vector<128x128xf32>
    %c0_3 = arith.constant 0 : index
    %c0_4 = arith.constant 0 : index
    %4 = vector.load %arg3[%c0_3, %c0_4] : memref<1x128xf32, #tpu.memory_space<vmem>>, vector<1x128xf32>
    %5 = vector.broadcast %4 : vector<1x128xf32> to vector<128x128xf32>
    %6 = arith.addf %3, %5 : vector<128x128xf32>
    %cst = arith.constant 0.000000e+00 : f32
    %7 = vector.broadcast %cst : f32 to vector<128x128xf32>
    %8 = arith.maximumf %6, %7 : vector<128x128xf32>
    %9 = arith.truncf %8 : vector<128x128xf32> to vector<128x128xbf16>
    %c0_5 = arith.constant 0 : index
    %c0_6 = arith.constant 0 : index
    %10 = vector.load %arg4[%c0_5, %c0_6] : memref<128x128xbf16, #tpu.memory_space<vmem>>, vector<128x128xbf16>
    tpu.vector_store %arg4[%c0_5, %c0_6], %9 {strides = array<i32>} : memref<128x128xbf16, #tpu.memory_space<vmem>>, vector<128x128xbf16>,
    return
  }
  func.func @transform_0(%arg0: i32) -> (i32, i32) {
    %c0_i32 = arith.constant 0 : i32
    %c0_i32_0 = arith.constant 0 : i32
    return %arg0, %c0_i32 : i32, i32
  }
  func.func @transform_1(%arg0: i32) -> (i32, i32) {
    %c0_i32 = arith.constant 0 : i32
    %c0_i32_0 = arith.constant 0 : i32
    %c0_i32_1 = arith.constant 0 : i32
    return %c0_i32, %c0_i32_0 : i32, i32
  }
  func.func @transform_2(%arg0: i32) -> (i32, i32) {
    %c0_i32 = arith.constant 0 : i32
    %c0_i32_0 = arith.constant 0 : i32
    %c0_i32_1 = arith.constant 0 : i32
    return %c0_i32, %c0_i32_0 : i32, i32
  }
  func.func @transform_3(%arg0: i32) -> (i32, i32) {
    %c0_i32 = arith.constant 0 : i32
    %c0_i32_0 = arith.constant 0 : i32
    return %arg0, %c0_i32 : i32, i32
  }
}

module attributes {stable_mosaic.version = 11 : i64} {
  func.func @_conv_sc_stats_kernel(%arg0: i32, %arg1: i32, %arg2: memref<64x128xbf16, #tpu.memory_space<vmem>>, %arg3: memref<128x128xbf16, #tpu.memory_space<vmem>>, %arg4: memref<64x128xbf16, #tpu.memory_space<vmem>>, %arg5: memref<128x128xbf16, #tpu.memory_space<vmem>>, %arg6: memref<64x128xf32, #tpu.memory_space<vmem>>, %arg7: memref<1x8x128xf32, #tpu.memory_space<vmem>>, %arg8: memref<64x128xf32, #tpu.memory_space<vmem>>, %arg9: memref<1x8x128xf32, #tpu.memory_space<vmem>>) attributes {dimension_semantics = [#tpu.dimension_semantics<parallel>, #tpu.dimension_semantics<arbitrary>], iteration_bounds = array<i64: 2, 1>, scalar_prefetch = 0 : i64, scratch_operands = 0 : i64, tpu.core_type = #tpu.core_type<tc>, window_params = [{transform_indices = @transform_0, window_bounds = array<i64: 64, 128>}, {transform_indices = @transform_1, window_bounds = array<i64: 128, 128>}, {transform_indices = @transform_2, window_bounds = array<i64: 64, 128>}, {pipeline_mode = #tpu.pipeline_mode<synchronous>, transform_indices = @transform_3, window_bounds = array<i64: 128, 128>}, {transform_indices = @transform_4, window_bounds = array<i64: 64, 128>}, {transform_indices = @transform_5, window_bounds = array<i64: 1, 8, 128>}, {transform_indices = @transform_6, window_bounds = array<i64: 64, 128>}, {transform_indices = @transform_7, window_bounds = array<i64: 1, 8, 128>}]} {
    %c0_i32 = arith.constant 0 : i32
    %0 = arith.cmpi eq, %arg1, %c0_i32 : i32
    %1 = arith.extui %0 : i1 to i32
    %c0_i32_0 = arith.constant 0 : i32
    %2 = arith.cmpi ne, %1, %c0_i32_0 : i32
    scf.if %2 {
      %cst_10 = arith.constant 0.000000e+00 : f32
      %12 = vector.broadcast %cst_10 : f32 to vector<64x128xf32>
      %c0_11 = arith.constant 0 : index
      %c0_12 = arith.constant 0 : index
      %13 = vector.load %arg6[%c0_11, %c0_12] : memref<64x128xf32, #tpu.memory_space<vmem>>, vector<64x128xf32>
      tpu.vector_store %arg6[%c0_11, %c0_12], %12 {strides = array<i32>} : memref<64x128xf32, #tpu.memory_space<vmem>>, vector<64x128xf32>,
      %c0_13 = arith.constant 0 : index
      %c0_14 = arith.constant 0 : index
      %14 = vector.load %arg4[%c0_13, %c0_14] : memref<64x128xbf16, #tpu.memory_space<vmem>>, vector<64x128xbf16>
      %c0_15 = arith.constant 0 : index
      %c0_16 = arith.constant 0 : index
      %15 = vector.load %arg5[%c0_15, %c0_16] : memref<128x128xbf16, #tpu.memory_space<vmem>>, vector<128x128xbf16>
      %cst_17 = arith.constant dense<0.000000e+00> : vector<64x128xf32>
      %16 = tpu.matmul %14, %15, %cst_17 {dimension_numbers = #tpu.dot_dimension_numbers<[1], [0], [0], [1], [0, 0, 1, 1], [], []>} : vector<64x128xbf16>, vector<128x128xbf16>, vector<64x128xf32> -> vector<64x128xf32>
      %c0_18 = arith.constant 0 : index
      %c0_19 = arith.constant 0 : index
      %17 = vector.load %arg8[%c0_18, %c0_19] : memref<64x128xf32, #tpu.memory_space<vmem>>, vector<64x128xf32>
      tpu.vector_store %arg8[%c0_18, %c0_19], %16 {strides = array<i32>} : memref<64x128xf32, #tpu.memory_space<vmem>>, vector<64x128xf32>,
      %cst_20 = arith.constant dense<0.000000e+00> : vector<128xf32>
      %18 = vector.multi_reduction <add>, %16, %cst_20 [0] : vector<64x128xf32> to vector<128xf32>
      %19 = vector.shape_cast %18 : vector<128xf32> to vector<1x128xf32>
      %20 = arith.mulf %16, %16 : vector<64x128xf32>
      %cst_21 = arith.constant dense<0.000000e+00> : vector<128xf32>
      %21 = vector.multi_reduction <add>, %20, %cst_21 [0] : vector<64x128xf32> to vector<128xf32>
      %22 = vector.shape_cast %21 : vector<128xf32> to vector<1x128xf32>
      %cst_22 = arith.constant 0.000000e+00 : f32
      %23 = vector.broadcast %cst_22 : f32 to vector<6x128xf32>
      %24 = tpu.concatenate %19, %22, %23 in 0 : vector<1x128xf32>, vector<1x128xf32>, vector<6x128xf32> -> vector<8x128xf32>
      %25 = vector.shape_cast %24 : vector<8x128xf32> to vector<1x8x128xf32>
      %c0_23 = arith.constant 0 : index
      %c0_24 = arith.constant 0 : index
      %c0_25 = arith.constant 0 : index
      %26 = vector.load %arg9[%c0_23, %c0_24, %c0_25] : memref<1x8x128xf32, #tpu.memory_space<vmem>>, vector<1x8x128xf32>
      tpu.vector_store %arg9[%c0_23, %c0_24, %c0_25], %25 {strides = array<i32>} : memref<1x8x128xf32, #tpu.memory_space<vmem>>, vector<1x8x128xf32>,
    } else {
    }
    %c0 = arith.constant 0 : index
    %c0_1 = arith.constant 0 : index
    %3 = vector.load %arg6[%c0, %c0_1] : memref<64x128xf32, #tpu.memory_space<vmem>>, vector<64x128xf32>
    %c0_2 = arith.constant 0 : index
    %c0_3 = arith.constant 0 : index
    %4 = vector.load %arg2[%c0_2, %c0_3] : memref<64x128xbf16, #tpu.memory_space<vmem>>, vector<64x128xbf16>
    %c0_4 = arith.constant 0 : index
    %c0_5 = arith.constant 0 : index
    %5 = vector.load %arg3[%c0_4, %c0_5] : memref<128x128xbf16, #tpu.memory_space<vmem>>, vector<128x128xbf16>
    %cst = arith.constant dense<0.000000e+00> : vector<64x128xf32>
    %6 = tpu.matmul %4, %5, %cst {dimension_numbers = #tpu.dot_dimension_numbers<[1], [0], [0], [1], [0, 0, 1, 1], [], []>} : vector<64x128xbf16>, vector<128x128xbf16>, vector<64x128xf32> -> vector<64x128xf32>
    %7 = arith.addf %3, %6 : vector<64x128xf32>
    %c0_6 = arith.constant 0 : index
    %c0_7 = arith.constant 0 : index
    %8 = vector.load %arg6[%c0_6, %c0_7] : memref<64x128xf32, #tpu.memory_space<vmem>>, vector<64x128xf32>
    tpu.vector_store %arg6[%c0_6, %c0_7], %7 {strides = array<i32>} : memref<64x128xf32, #tpu.memory_space<vmem>>, vector<64x128xf32>,
    %c0_i32_8 = arith.constant 0 : i32
    %9 = arith.cmpi eq, %arg1, %c0_i32_8 : i32
    %10 = arith.extui %9 : i1 to i32
    %c0_i32_9 = arith.constant 0 : i32
    %11 = arith.cmpi ne, %10, %c0_i32_9 : i32
    scf.if %11 {
      %c0_10 = arith.constant 0 : index
      %c0_11 = arith.constant 0 : index
      %12 = vector.load %arg6[%c0_10, %c0_11] : memref<64x128xf32, #tpu.memory_space<vmem>>, vector<64x128xf32>
      %cst_12 = arith.constant dense<0.000000e+00> : vector<128xf32>
      %13 = vector.multi_reduction <add>, %12, %cst_12 [0] : vector<64x128xf32> to vector<128xf32>
      %14 = vector.shape_cast %13 : vector<128xf32> to vector<1x128xf32>
      %15 = arith.mulf %12, %12 : vector<64x128xf32>
      %cst_13 = arith.constant dense<0.000000e+00> : vector<128xf32>
      %16 = vector.multi_reduction <add>, %15, %cst_13 [0] : vector<64x128xf32> to vector<128xf32>
      %17 = vector.shape_cast %16 : vector<128xf32> to vector<1x128xf32>
      %cst_14 = arith.constant 0.000000e+00 : f32
      %18 = vector.broadcast %cst_14 : f32 to vector<6x128xf32>
      %19 = tpu.concatenate %14, %17, %18 in 0 : vector<1x128xf32>, vector<1x128xf32>, vector<6x128xf32> -> vector<8x128xf32>
      %20 = vector.shape_cast %19 : vector<8x128xf32> to vector<1x8x128xf32>
      %c0_15 = arith.constant 0 : index
      %c0_16 = arith.constant 0 : index
      %c0_17 = arith.constant 0 : index
      %21 = vector.load %arg7[%c0_15, %c0_16, %c0_17] : memref<1x8x128xf32, #tpu.memory_space<vmem>>, vector<1x8x128xf32>
      tpu.vector_store %arg7[%c0_15, %c0_16, %c0_17], %20 {strides = array<i32>} : memref<1x8x128xf32, #tpu.memory_space<vmem>>, vector<1x8x128xf32>,
    } else {
    }
    return
  }
  func.func @transform_0(%arg0: i32, %arg1: i32) -> (i32, i32) {
    %c0_i32 = arith.constant 0 : i32
    return %arg0, %arg1 : i32, i32
  }
  func.func @transform_1(%arg0: i32, %arg1: i32) -> (i32, i32) {
    %c0_i32 = arith.constant 0 : i32
    %c0_i32_0 = arith.constant 0 : i32
    return %arg1, %c0_i32 : i32, i32
  }
  func.func @transform_2(%arg0: i32, %arg1: i32) -> (i32, i32) {
    %c0_i32 = arith.constant 0 : i32
    %c0_i32_0 = arith.constant 0 : i32
    return %arg0, %c0_i32 : i32, i32
  }
  func.func @transform_3(%arg0: i32, %arg1: i32) -> (i32, i32) {
    %c0_i32 = arith.constant 0 : i32
    %c0_i32_0 = arith.constant 0 : i32
    %c0_i32_1 = arith.constant 0 : i32
    return %c0_i32, %c0_i32_0 : i32, i32
  }
  func.func @transform_4(%arg0: i32, %arg1: i32) -> (i32, i32) {
    %c0_i32 = arith.constant 0 : i32
    %c0_i32_0 = arith.constant 0 : i32
    return %arg0, %c0_i32 : i32, i32
  }
  func.func @transform_5(%arg0: i32, %arg1: i32) -> (i32, i32, i32) {
    %c0_i32 = arith.constant 0 : i32
    %c0_i32_0 = arith.constant 0 : i32
    %c0_i32_1 = arith.constant 0 : i32
    return %arg0, %c0_i32, %c0_i32_0 : i32, i32, i32
  }
  func.func @transform_6(%arg0: i32, %arg1: i32) -> (i32, i32) {
    %c0_i32 = arith.constant 0 : i32
    %c0_i32_0 = arith.constant 0 : i32
    return %arg0, %c0_i32 : i32, i32
  }
  func.func @transform_7(%arg0: i32, %arg1: i32) -> (i32, i32, i32) {
    %c0_i32 = arith.constant 0 : i32
    %c0_i32_0 = arith.constant 0 : i32
    %c0_i32_1 = arith.constant 0 : i32
    return %arg0, %c0_i32, %c0_i32_0 : i32, i32, i32
  }
}

module attributes {stable_mosaic.version = 11 : i64} {
  func.func @_bn_add_affine_relu_kernel(%arg0: i32, %arg1: memref<128x128xf32, #tpu.memory_space<vmem>>, %arg2: memref<1x128xf32, #tpu.memory_space<vmem>>, %arg3: memref<1x128xf32, #tpu.memory_space<vmem>>, %arg4: memref<128x128xf32, #tpu.memory_space<vmem>>, %arg5: memref<1x128xf32, #tpu.memory_space<vmem>>, %arg6: memref<1x128xf32, #tpu.memory_space<vmem>>, %arg7: memref<128x128xf32, #tpu.memory_space<vmem>>) attributes {dimension_semantics = [#tpu.dimension_semantics<parallel>], iteration_bounds = array<i64: 1>, scalar_prefetch = 0 : i64, scratch_operands = 0 : i64, tpu.core_type = #tpu.core_type<tc>, window_params = [{transform_indices = @transform_0, window_bounds = array<i64: 128, 128>}, {pipeline_mode = #tpu.pipeline_mode<synchronous>, transform_indices = @transform_1, window_bounds = array<i64: 1, 128>}, {pipeline_mode = #tpu.pipeline_mode<synchronous>, transform_indices = @transform_2, window_bounds = array<i64: 1, 128>}, {transform_indices = @transform_3, window_bounds = array<i64: 128, 128>}, {pipeline_mode = #tpu.pipeline_mode<synchronous>, transform_indices = @transform_4, window_bounds = array<i64: 1, 128>}, {pipeline_mode = #tpu.pipeline_mode<synchronous>, transform_indices = @transform_5, window_bounds = array<i64: 1, 128>}, {transform_indices = @transform_6, window_bounds = array<i64: 128, 128>}]} {
    %c0 = arith.constant 0 : index
    %c0_0 = arith.constant 0 : index
    %0 = vector.load %arg1[%c0, %c0_0] : memref<128x128xf32, #tpu.memory_space<vmem>>, vector<128x128xf32>
    %c0_1 = arith.constant 0 : index
    %c0_2 = arith.constant 0 : index
    %1 = vector.load %arg2[%c0_1, %c0_2] : memref<1x128xf32, #tpu.memory_space<vmem>>, vector<1x128xf32>
    %2 = vector.broadcast %1 : vector<1x128xf32> to vector<128x128xf32>
    %3 = arith.mulf %0, %2 : vector<128x128xf32>
    %c0_3 = arith.constant 0 : index
    %c0_4 = arith.constant 0 : index
    %4 = vector.load %arg3[%c0_3, %c0_4] : memref<1x128xf32, #tpu.memory_space<vmem>>, vector<1x128xf32>
    %5 = vector.broadcast %4 : vector<1x128xf32> to vector<128x128xf32>
    %6 = arith.addf %3, %5 : vector<128x128xf32>
    %c0_5 = arith.constant 0 : index
    %c0_6 = arith.constant 0 : index
    %7 = vector.load %arg4[%c0_5, %c0_6] : memref<128x128xf32, #tpu.memory_space<vmem>>, vector<128x128xf32>
    %c0_7 = arith.constant 0 : index
    %c0_8 = arith.constant 0 : index
    %8 = vector.load %arg5[%c0_7, %c0_8] : memref<1x128xf32, #tpu.memory_space<vmem>>, vector<1x128xf32>
    %9 = vector.broadcast %8 : vector<1x128xf32> to vector<128x128xf32>
    %10 = arith.mulf %7, %9 : vector<128x128xf32>
    %c0_9 = arith.constant 0 : index
    %c0_10 = arith.constant 0 : index
    %11 = vector.load %arg6[%c0_9, %c0_10] : memref<1x128xf32, #tpu.memory_space<vmem>>, vector<1x128xf32>
    %12 = vector.broadcast %11 : vector<1x128xf32> to vector<128x128xf32>
    %13 = arith.addf %10, %12 : vector<128x128xf32>
    %14 = arith.addf %6, %13 : vector<128x128xf32>
    %cst = arith.constant 0.000000e+00 : f32
    %15 = vector.broadcast %cst : f32 to vector<128x128xf32>
    %16 = arith.maximumf %14, %15 : vector<128x128xf32>
    %c0_11 = arith.constant 0 : index
    %c0_12 = arith.constant 0 : index
    %17 = vector.load %arg7[%c0_11, %c0_12] : memref<128x128xf32, #tpu.memory_space<vmem>>, vector<128x128xf32>
    tpu.vector_store %arg7[%c0_11, %c0_12], %16 {strides = array<i32>} : memref<128x128xf32, #tpu.memory_space<vmem>>, vector<128x128xf32>,
    return
  }
  func.func @transform_0(%arg0: i32) -> (i32, i32) {
    %c0_i32 = arith.constant 0 : i32
    %c0_i32_0 = arith.constant 0 : i32
    return %arg0, %c0_i32 : i32, i32
  }
  func.func @transform_1(%arg0: i32) -> (i32, i32) {
    %c0_i32 = arith.constant 0 : i32
    %c0_i32_0 = arith.constant 0 : i32
    %c0_i32_1 = arith.constant 0 : i32
    return %c0_i32, %c0_i32_0 : i32, i32
  }
  func.func @transform_2(%arg0: i32) -> (i32, i32) {
    %c0_i32 = arith.constant 0 : i32
    %c0_i32_0 = arith.constant 0 : i32
    %c0_i32_1 = arith.constant 0 : i32
    return %c0_i32, %c0_i32_0 : i32, i32
  }
  func.func @transform_3(%arg0: i32) -> (i32, i32) {
    %c0_i32 = arith.constant 0 : i32
    %c0_i32_0 = arith.constant 0 : i32
    return %arg0, %c0_i32 : i32, i32
  }
  func.func @transform_4(%arg0: i32) -> (i32, i32) {
    %c0_i32 = arith.constant 0 : i32
    %c0_i32_0 = arith.constant 0 : i32
    %c0_i32_1 = arith.constant 0 : i32
    return %c0_i32, %c0_i32_0 : i32, i32
  }
  func.func @transform_5(%arg0: i32) -> (i32, i32) {
    %c0_i32 = arith.constant 0 : i32
    %c0_i32_0 = arith.constant 0 : i32
    %c0_i32_1 = arith.constant 0 : i32
    return %c0_i32, %c0_i32_0 : i32, i32
  }
  func.func @transform_6(%arg0: i32) -> (i32, i32) {
    %c0_i32 = arith.constant 0 : i32
    %c0_i32_0 = arith.constant 0 : i32
    return %arg0, %c0_i32 : i32, i32
  }
}

</mosaic_0001>

<llo_original>
// kernel: basic_block_forward.5
$region0: #{basic_block_forward.5}
  #allocation0 [shape = 'u32[]', space=smem, size = 0x4, offset = 0x4, fixed_abs, tag = 'smem constant byte address 0x4 - core index']
  #allocation1 [shape = 'u32[72,128]{1,0:T(1,128)}', space=vmem, size = 0x9000, scoped, tag = 'internal scratch']
  %s0 = inlined_call_operand.vmem [shape: f32[128,128], index: 0, kind: input, shape index: {}]
  %s1 = inlined_call_operand.vmem [shape: f32[1,128], index: 1, kind: input, shape index: {}]
  %s2 = inlined_call_operand.vmem [shape: f32[1,128], index: 2, kind: input, shape index: {}]
  %s3 = inlined_call_operand.vmem [shape: bf16[128,128], index: 3, kind: output, shape index: {}]
  %s4 = sld [smem:[#allocation0]]
  $region22: #{basic_block_forward.5} parent=0
    _
  %s6 = ssub.s32 1, %s4
  %s7 = scalar_select 0, %s6, %s4
  // Predicated region
  $region2: #{basic_block_forward.5} parent=0 // pred_check
    _
  $region3: #{basic_block_forward.5} parent=0 // pred_check_branch
    %9 = sbr.rel (0) target = $region5
  $region4: #{basic_block_forward.5} parent=0 // pred_region
    _
  $region5: #{basic_block_forward.5} parent=0 // pred_fallthru
    _
  // Predicated region
  $region6: #{basic_block_forward.5} parent=0 // pred_check
    _
  $region7: #{basic_block_forward.5} parent=0 // pred_check_branch
    %11 = sbr.rel (0) target = $region9
  $region8: #{basic_block_forward.5} parent=0 // pred_region
    _
  $region9: #{basic_block_forward.5} parent=0 // pred_fallthru
    _
  // Predicated region
  $region10: #{basic_block_forward.5} parent=0 // pred_check
    _
  $region11: #{basic_block_forward.5} parent=0 // pred_check_branch
    %13 = sbr.rel (0) target = $region13
  $region12: #{basic_block_forward.5} parent=0 // pred_region
    _
  $region13: #{basic_block_forward.5} parent=0 // pred_fallthru
    _
  %v14 = vld [vmem:[%s0] sm:$0xff]
  %v15 = vld [vmem:[%s0 + $0x8] sm:$0xff]
  %v16 = vld [vmem:[%s0 + $0x10] sm:$0xff]
  %v17 = vld [vmem:[%s0 + $0x18] sm:$0xff]
  %v18 = vld [vmem:[%s0 + $0x20] sm:$0xff]
  %v19 = vld [vmem:[%s0 + $0x28] sm:$0xff]
  %v20 = vld [vmem:[%s0 + $0x30] sm:$0xff]
  %v21 = vld [vmem:[%s0 + $0x38] sm:$0xff]
  %v22 = vld [vmem:[%s0 + $0x40] sm:$0xff]
  %v23 = vld [vmem:[%s0 + $0x48] sm:$0xff]
  %v24 = vld [vmem:[%s0 + $0x50] sm:$0xff]
  %v25 = vld [vmem:[%s0 + $0x58] sm:$0xff]
  %v26 = vld [vmem:[%s0 + $0x60] sm:$0xff]
  %v27 = vld [vmem:[%s0 + $0x68] sm:$0xff]
  %v28 = vld [vmem:[%s0 + $0x70] sm:$0xff]
  %v29 = vld [vmem:[%s0 + $0x78] sm:$0xff]
  %v30 = vld [vmem:[%s1] sm:$0x1]
  %v32 = vperm.slane %v30, 0
  %v34 = vmul.f32 %v14, %v32
  %v35 = vmul.f32 %v15, %v32
  %v36 = vmul.f32 %v16, %v32
  %v37 = vmul.f32 %v17, %v32
  %v38 = vmul.f32 %v18, %v32
  %v39 = vmul.f32 %v19, %v32
  %v40 = vmul.f32 %v20, %v32
  %v41 = vmul.f32 %v21, %v32
  %v42 = vmul.f32 %v22, %v32
  %v43 = vmul.f32 %v23, %v32
  %v44 = vmul.f32 %v24, %v32
  %v45 = vmul.f32 %v25, %v32
  %v46 = vmul.f32 %v26, %v32
  %v47 = vmul.f32 %v27, %v32
  %v48 = vmul.f32 %v28, %v32
  %v49 = vmul.f32 %v29, %v32
  %v50 = vld [vmem:[%s2] sm:$0x1]
  %v52 = vperm.slane %v50, 0
  %v54 = vadd.f32 %v34, %v52
  %v55 = vadd.f32 %v35, %v52
  %v56 = vadd.f32 %v36, %v52
  %v57 = vadd.f32 %v37, %v52
  %v58 = vadd.f32 %v38, %v52
  %v59 = vadd.f32 %v39, %v52
  %v60 = vadd.f32 %v40, %v52
  %v61 = vadd.f32 %v41, %v52
  %v62 = vadd.f32 %v42, %v52
  %v63 = vadd.f32 %v43, %v52
  %v64 = vadd.f32 %v44, %v52
  %v65 = vadd.f32 %v45, %v52
  %v66 = vadd.f32 %v46, %v52
  %v67 = vadd.f32 %v47, %v52
  %v68 = vadd.f32 %v48, %v52
  %v69 = vadd.f32 %v49, %v52
  %v70 = vmax.f32 %v54, 0.0
  %v71 = vmax.f32 %v55, 0.0
  %v72 = vmax.f32 %v56, 0.0
  %v73 = vmax.f32 %v57, 0.0
  %v74 = vmax.f32 %v58, 0.0
  %v75 = vmax.f32 %v59, 0.0
  %v76 = vmax.f32 %v60, 0.0
  %v77 = vmax.f32 %v61, 0.0
  %v78 = vmax.f32 %v62, 0.0
  %v79 = vmax.f32 %v63, 0.0
  %v80 = vmax.f32 %v64, 0.0
  %v81 = vmax.f32 %v65, 0.0
  %v82 = vmax.f32 %v66, 0.0
  %v83 = vmax.f32 %v67, 0.0
  %v84 = vmax.f32 %v68, 0.0
  %v85 = vmax.f32 %v69, 0.0
  %v86 = vpack.c.bf16 %v70, %v70
  %v87 = vpack.c.bf16 %v71, %v71
  %v88 = vpack.c.bf16 %v72, %v72
  %v89 = vpack.c.bf16 %v73, %v73
  %v90 = vpack.c.bf16 %v74, %v74
  %v91 = vpack.c.bf16 %v75, %v75
  %v92 = vpack.c.bf16 %v76, %v76
  %v93 = vpack.c.bf16 %v77, %v77
  %v94 = vpack.c.bf16 %v78, %v78
  %v95 = vpack.c.bf16 %v79, %v79
  %v96 = vpack.c.bf16 %v80, %v80
  %v97 = vpack.c.bf16 %v81, %v81
  %v98 = vpack.c.bf16 %v82, %v82
  %v99 = vpack.c.bf16 %v83, %v83
  %v100 = vpack.c.bf16 %v84, %v84
  %v101 = vpack.c.bf16 %v85, %v85
  %102 = vst [vmem:[%s3] sm:$0xf] %v86
  %103 = vst [vmem:[%s3 + $0x4] sm:$0xf] %v87
  %104 = vst [vmem:[%s3 + $0x8] sm:$0xf] %v88
  %105 = vst [vmem:[%s3 + $0xc] sm:$0xf] %v89
  %106 = vst [vmem:[%s3 + $0x10] sm:$0xf] %v90
  %107 = vst [vmem:[%s3 + $0x14] sm:$0xf] %v91
  %108 = vst [vmem:[%s3 + $0x18] sm:$0xf] %v92
  %109 = vst [vmem:[%s3 + $0x1c] sm:$0xf] %v93
  %110 = vst [vmem:[%s3 + $0x20] sm:$0xf] %v94
  %111 = vst [vmem:[%s3 + $0x24] sm:$0xf] %v95
  %112 = vst [vmem:[%s3 + $0x28] sm:$0xf] %v96
  %113 = vst [vmem:[%s3 + $0x2c] sm:$0xf] %v97
  %114 = vst [vmem:[%s3 + $0x30] sm:$0xf] %v98
  %115 = vst [vmem:[%s3 + $0x34] sm:$0xf] %v99
  %116 = vst [vmem:[%s3 + $0x38] sm:$0xf] %v100
  %117 = vst [vmem:[%s3 + $0x3c] sm:$0xf] %v101
  // Predicated region
  $region14: #{basic_block_forward.5} parent=0 // pred_check
    _
  $region15: #{basic_block_forward.5} parent=0 // pred_check_branch
    %119 = sbr.rel (0) target = $region17
  $region16: #{basic_block_forward.5} parent=0 // pred_region
    _
  $region17: #{basic_block_forward.5} parent=0 // pred_fallthru
    _
  // Predicated region
  $region18: #{basic_block_forward.5} parent=0 // pred_check
    _
  $region19: #{basic_block_forward.5} parent=0 // pred_check_branch
    %121 = sbr.rel (0) target = $region21
  $region20: #{basic_block_forward.5} parent=0 // pred_region
    _
  $region21: #{basic_block_forward.5} parent=0 // pred_fallthru
    _

// kernel: basic_block_forward.4
$region0: #{basic_block_forward.4}
  #allocation0 [shape = 'u32[]', space=smem, size = 0x4, offset = 0x4, fixed_abs, tag = 'smem constant byte address 0x4 - core index']
  #allocation1 [shape = 'u32[72,128]{1,0:T(1,128)}', space=vmem, size = 0x9000, scoped, tag = 'internal scratch']
  %s0 = inlined_call_operand.vmem [shape: bf16[128,128], index: 0, kind: input, shape index: {}]
  %s1 = inlined_call_operand.vmem [shape: bf16[128,128], index: 1, kind: input, shape index: {}]
  %s2 = inlined_call_operand.vmem [shape: f32[128,128], index: 2, kind: output, shape index: {0}]
  %s3 = inlined_call_operand.vmem [shape: f32[2,8,128], index: 3, kind: output, shape index: {1}]
  %4 = xla_tuple %s2, %s3
  %s5 = sld [smem:[#allocation0]]
  $region57: #{basic_block_forward.4} parent=0
    _
  %s7 = ssub.s32 1, %s5
  %s8 = scalar_select 0, %s7, %s5
  loop: start=0, step=1, limit=4
  $region2: #{basic_block_forward.4} parent=0 // loop_pre_header
    _
  $region3: #{basic_block_forward.4} parent=0 // loop_header
    %s10 = sphi 0, %s14
    %p11 = scmp.ge.s32.totalorder %s10, 4
    %s17 = sphi 0, %s29
    %s18 = sphi 0, %s25
    %s19 = sphi 0, %s17
    %s20 = sphi 0, %s18
    %s21 = sphi 0, %s19
    %s22 = sphi 0, %s20
    %s34 = sphi 0, %s36
    %s37 = sphi 0, %s34
    %s38 = sphi 0, %s37
    %s54 = sphi 0, %s38
    %s60 = sphi 0, %s62
    %s63 = sphi 0, %s60
    %s64 = sphi 0, %s63
    %s80 = sphi 0, %s64
    %s86 = sphi 0, %s88
    %s89 = sphi 0, %s86
    %s90 = sphi 0, %s89
    %s106 = sphi 0, %s90
    %s112 = sphi 0, %s114
    %s115 = sphi 0, %s112
    %s116 = sphi 0, %s115
    %s132 = sphi 0, %s116
  $region4: #{basic_block_forward.4} parent=0 // loop_header_branch
    %13 = sbr.rel (%p11) target = $region8
  $region5: #{basic_block_forward.4} parent=0 // loop_body
    %s15 = ssub.s32 %s10, 1
    %s16 = ssub.s32 %s10, 2
    %s23 = sadd.s32 1, %s18
    %p24 = scmp.ge.s32.totalorder %s23, 1
    %s25 = scalar_select %p24, 0, %s23
    %s26 = sadd.s32 1, %s17
    %s27 = scalar_select %p24, %s26, %s17
    %p28 = scmp.ge.s32.totalorder %s27, 2
    %s29 = scalar_select %p28, 0, %s27
    %s30 = ssub.s32 %s17, %s29
    %s31 = ssub.s32 %s18, %s25
    %s32 = sor.u32 %s30, %s31
    %p33 = scmp.eq.s32.totalorder %s32, 0
    %s35 = sadd.s32 %s34, 1
    %s36 = scalar_select %p33, %s34, %s35
    %p39 = pneg %p33
    %p40 = scmp.eq.s32.totalorder %s10, 1
    %p41 = por %p39, %p40
    %p42 = scmp.ne.s32.totalorder %s34, %s37
    %p43 = scmp.eq.s32.totalorder %s10, 0
    %p44 = por %p42, %p43
    %p45 = scmp.ne.s32.totalorder %s34, %s37
    %p46 = scmp.eq.s32.totalorder %s15, 1
    %p47 = por %p45, %p46
    %p48 = scmp.ne.s32.totalorder %s37, %s38
    %p49 = scmp.eq.s32.totalorder %s15, 0
    %p50 = por %p48, %p49
    %p51 = scmp.ne.s32.totalorder %s37, %s38
    %p52 = scmp.eq.s32.totalorder %s16, 1
    %p53 = por %p51, %p52
    %p55 = scmp.ne.s32.totalorder %s38, %s54
    %p56 = scmp.eq.s32.totalorder %s16, 0
    %p57 = por %p55, %p56
    %s58 = ssub.s32 %s18, %s25
    %p59 = scmp.eq.s32.totalorder %s58, 0
    %s61 = sadd.s32 %s60, 1
    %s62 = scalar_select %p59, %s60, %s61
    %p65 = pneg %p59
    %p66 = scmp.eq.s32.totalorder %s10, 1
    %p67 = por %p65, %p66
    %p68 = scmp.ne.s32.totalorder %s60, %s63
    %p69 = scmp.eq.s32.totalorder %s10, 0
    %p70 = por %p68, %p69
    %p71 = scmp.ne.s32.totalorder %s60, %s63
    %p72 = scmp.eq.s32.totalorder %s15, 1
    %p73 = por %p71, %p72
    %p74 = scmp.ne.s32.totalorder %s63, %s64
    %p75 = scmp.eq.s32.totalorder %s15, 0
    %p76 = por %p74, %p75
    %p77 = scmp.ne.s32.totalorder %s63, %s64
    %p78 = scmp.eq.s32.totalorder %s16, 1
    %p79 = por %p77, %p78
    %p81 = scmp.ne.s32.totalorder %s64, %s80
    %p82 = scmp.eq.s32.totalorder %s16, 0
    %p83 = por %p81, %p82
    %s84 = ssub.s32 %s17, %s29
    %p85 = scmp.eq.s32.totalorder %s84, 0
    %s87 = sadd.s32 %s86, 1
    %s88 = scalar_select %p85, %s86, %s87
    %p91 = pneg %p85
    %p92 = scmp.eq.s32.totalorder %s10, 1
    %p93 = por %p91, %p92
    %p94 = scmp.ne.s32.totalorder %s86, %s89
    %p95 = scmp.eq.s32.totalorder %s10, 0
    %p96 = por %p94, %p95
    %p97 = scmp.ne.s32.totalorder %s86, %s89
    %p98 = scmp.eq.s32.totalorder %s15, 1
    %p99 = por %p97, %p98
    %p100 = scmp.ne.s32.totalorder %s89, %s90
    %p101 = scmp.eq.s32.totalorder %s15, 0
    %p102 = por %p100, %p101
    %p103 = scmp.ne.s32.totalorder %s89, %s90
    %p104 = scmp.eq.s32.totalorder %s16, 1
    %p105 = por %p103, %p104
    %p107 = scmp.ne.s32.totalorder %s90, %s106
    %p108 = scmp.eq.s32.totalorder %s16, 0
    %p109 = por %p107, %p108
    %s110 = ssub.s32 %s17, %s29
    %p111 = scmp.eq.s32.totalorder %s110, 0
    %s113 = sadd.s32 %s112, 1
    %s114 = scalar_select %p111, %s112, %s113
    %p117 = pneg %p111
    %p118 = scmp.eq.s32.totalorder %s10, 1
    %p119 = por %p117, %p118
    %p120 = scmp.ne.s32.totalorder %s112, %s115
    %p121 = scmp.eq.s32.totalorder %s10, 0
    %p122 = por %p120, %p121
    %p123 = scmp.ne.s32.totalorder %s112, %s115
    %p124 = scmp.eq.s32.totalorder %s15, 1
    %p125 = por %p123, %p124
    %p126 = scmp.ne.s32.totalorder %s115, %s116
    %p127 = scmp.eq.s32.totalorder %s15, 0
    %p128 = por %p126, %p127
    %p129 = scmp.ne.s32.totalorder %s115, %s116
    %p130 = scmp.eq.s32.totalorder %s16, 1
    %p131 = por %p129, %p130
    %p133 = scmp.ne.s32.totalorder %s116, %s132
    %p134 = scmp.eq.s32.totalorder %s16, 0
    %p135 = por %p133, %p134
    %p136 = scmp.le.s32.totalorder 1, %s10
    %p137 = scmp.lt.s32.totalorder %s10, 3
    %p138 = pnand %p136, %p137
    %p139 = pneg %p138
    // Predicated region
    $region9: #{basic_block_forward.4} parent=5 // pred_check
      _
    $region10: #{basic_block_forward.4} parent=5 // pred_check_branch
      %141 = sbr.rel (%p138) target = $region12
    $region11: #{basic_block_forward.4} parent=5 // pred_region
      %s142 = ssub.s32 %s10, 1
      // Predicated region
      $region13: #{basic_block_forward.4} parent=11 // pred_check
        %p143 = pneg %p76
      $region14: #{basic_block_forward.4} parent=11 // pred_check_branch
        %145 = sbr.rel (%p143) target = $region16
      $region15: #{basic_block_forward.4} parent=11 // pred_region
        %s146 = smul.u32 16, %s20
        %p147 = scmp.lt.s32.totalorder %s146, 15
        %s148 = scalar_select %p147, %s146, 15
        %s149 = smul.addr %s148, 4
        %s150 = scalar_lea.vmem %s1, %s149
        %s151 = smul.u32 16, %s20
      $region16: #{basic_block_forward.4} parent=11 // pred_fallthru
        _
    $region12: #{basic_block_forward.4} parent=5 // pred_fallthru
      _
    %p152 = scmp.lt.s32.totalorder %s10, 2
    // Predicated region
    $region17: #{basic_block_forward.4} parent=5 // pred_check
      %p153 = pneg %p152
    $region18: #{basic_block_forward.4} parent=5 // pred_check_branch
      %155 = sbr.rel (%p153) target = $region20
    $region19: #{basic_block_forward.4} parent=5 // pred_region
      // Predicated region
      $region21: #{basic_block_forward.4} parent=19 // pred_check
        %p156 = pneg %p44
      $region22: #{basic_block_forward.4} parent=19 // pred_check_branch
        %158 = sbr.rel (%p156) target = $region24
      $region23: #{basic_block_forward.4} parent=19 // pred_region
        %s159 = smul.u32 8, %s17
        %p160 = scmp.lt.s32.totalorder %s159, 15
        %s161 = scalar_select %p160, %s159, 15
        %p162 = scmp.lt.s32.totalorder %s18, 0
        %s163 = scalar_select %p162, %s18, 0
        %s164 = sadd.s32 %s163, %s161
        %s165 = smul.addr %s164, 4
        %s166 = scalar_lea.vmem %s0, %s165
        %s167 = smul.u32 8, %s17
      $region24: #{basic_block_forward.4} parent=19 // pred_fallthru
        _
    $region20: #{basic_block_forward.4} parent=5 // pred_fallthru
      _
    %p168 = scmp.le.s32.totalorder 1, %s10
    %p169 = scmp.lt.s32.totalorder %s10, 3
    %p170 = pnand %p168, %p169
    %p171 = pneg %p170
    // Predicated region
    $region25: #{basic_block_forward.4} parent=5 // pred_check
      _
    $region26: #{basic_block_forward.4} parent=5 // pred_check_branch
      %173 = sbr.rel (%p170) target = $region28
    $region27: #{basic_block_forward.4} parent=5 // pred_region
      %s174 = ssub.s32 %s10, 1
      %s175 = smul.u32 8, %s19
      %p176 = scmp.lt.s32.totalorder %s175, 15
      %s177 = scalar_select %p176, %s175, 15
      %p178 = scmp.lt.s32.totalorder %s20, 0
      %s179 = scalar_select %p178, %s20, 0
      %s180 = sadd.s32 %s179, %s177
      %s181 = smul.addr %s180, 4
      %s182 = scalar_lea.vmem %s0, %s181
      %p183 = pneg %p50
      %p184 = pneg %p47
      %s185 = smul.u32 16, %s20
      %p186 = scmp.lt.s32.totalorder %s185, 15
      %s187 = scalar_select %p186, %s185, 15
      %s188 = smul.addr %s187, 4
      %s189 = scalar_lea.vmem %s1, %s188
      %p190 = pneg %p76
      %p191 = pneg %p73
      %p192 = pneg %p102
      %p193 = pneg %p99
      %s194 = smul.u32 8, %s19
      %p195 = scmp.lt.s32.totalorder %s194, 15
      %s196 = scalar_select %p195, %s194, 15
      %s197 = smul.addr %s196, 8
      %s198 = scalar_lea.vmem %s2, %s197
      %p199 = pneg %p128
      %p200 = pneg %p125
      %p201 = scmp.lt.s32.totalorder %s19, 1
      %s202 = scalar_select %p201, %s19, 1
      %s203 = smul.addr %s202, 8
      %s204 = scalar_lea.vmem %s3, %s203
      %s205 = smul.u32 8, %s19
      %p206 = scmp.lt.s32.totalorder %s205, 15
      %s207 = scalar_select %p206, %s205, 15
      %p208 = scmp.lt.s32.totalorder %s20, 0
      %s209 = scalar_select %p208, %s20, 0
      %s210 = sadd.s32 %s209, %s207
      %s211 = smul.addr %s210, 4
      %s212 = scalar_lea.vmem %s0, %s211
      %s213 = smul.u32 8, %s19
      %s214 = smul.u32 16, %s20
      %p215 = scmp.lt.s32.totalorder %s214, 15
      %s216 = scalar_select %p215, %s214, 15
      %s217 = smul.addr %s216, 4
      %s218 = scalar_lea.vmem %s1, %s217
      %s219 = smul.u32 16, %s20
      %s220 = smul.u32 8, %s19
      %p221 = scmp.lt.s32.totalorder %s220, 15
      %s222 = scalar_select %p221, %s220, 15
      %s223 = smul.addr %s222, 8
      %s224 = scalar_lea.vmem %s2, %s223
      %s225 = smul.u32 8, %s19
      %p226 = scmp.lt.s32.totalorder %s19, 1
      %s227 = scalar_select %p226, %s19, 1
      %s228 = smul.addr %s227, 8
      %s229 = scalar_lea.vmem %s3, %s228
      %p230 = scmp.eq.s32.totalorder %s20, 0
      // Predicated region
      $region29: #{basic_block_forward.4} parent=27 // pred_check
        %p231 = pneg %p230
      $region30: #{basic_block_forward.4} parent=27 // pred_check_branch
        %233 = sbr.rel (%p231) target = $region32
      $region31: #{basic_block_forward.4} parent=27 // pred_region
        %234 = vst [vmem:[%s224] sm:$0xff] 0.0
        %235 = vst [vmem:[%s224 + $0x8] sm:$0xff] 0.0
        %236 = vst [vmem:[%s224 + $0x10] sm:$0xff] 0.0
        %237 = vst [vmem:[%s224 + $0x18] sm:$0xff] 0.0
        %238 = vst [vmem:[%s224 + $0x20] sm:$0xff] 0.0
        %239 = vst [vmem:[%s224 + $0x28] sm:$0xff] 0.0
        %240 = vst [vmem:[%s224 + $0x30] sm:$0xff] 0.0
        %241 = vst [vmem:[%s224 + $0x38] sm:$0xff] 0.0
      $region32: #{basic_block_forward.4} parent=27 // pred_fallthru
        _
      %v242 = vld [vmem:[%s224] sm:$0xff]
      %v243 = vld [vmem:[%s224 + $0x8] sm:$0xff]
      %v244 = vld [vmem:[%s224 + $0x10] sm:$0xff]
      %v245 = vld [vmem:[%s224 + $0x18] sm:$0xff]
      %v246 = vld [vmem:[%s224 + $0x20] sm:$0xff]
      %v247 = vld [vmem:[%s224 + $0x28] sm:$0xff]
      %v248 = vld [vmem:[%s224 + $0x30] sm:$0xff]
      %v249 = vld [vmem:[%s224 + $0x38] sm:$0xff]
      %v250 = vld [vmem:[%s212] sm:$0xf]
      %v251 = vld [vmem:[%s212 + $0x4] sm:$0xf]
      %v252 = vld [vmem:[%s212 + $0x8] sm:$0xf]
      %v253 = vld [vmem:[%s212 + $0xc] sm:$0xf]
      %v254 = vld [vmem:[%s212 + $0x10] sm:$0xf]
      %v255 = vld [vmem:[%s212 + $0x14] sm:$0xf]
      %v256 = vld [vmem:[%s212 + $0x18] sm:$0xf]
      %v257 = vld [vmem:[%s212 + $0x1c] sm:$0xf]
      %v258 = vld [vmem:[%s218] sm:$0xf]
      %v259 = vld [vmem:[%s218 + $0x4] sm:$0xf]
      %v260 = vld [vmem:[%s218 + $0x8] sm:$0xf]
      %v261 = vld [vmem:[%s218 + $0xc] sm:$0xf]
      %v262 = vld [vmem:[%s218 + $0x10] sm:$0xf]
      %v263 = vld [vmem:[%s218 + $0x14] sm:$0xf]
      %v264 = vld [vmem:[%s218 + $0x18] sm:$0xf]
      %v265 = vld [vmem:[%s218 + $0x1c] sm:$0xf]
      %v266 = vld [vmem:[%s218 + $0x20] sm:$0xf]
      %v267 = vld [vmem:[%s218 + $0x24] sm:$0xf]
      %v268 = vld [vmem:[%s218 + $0x28] sm:$0xf]
      %v269 = vld [vmem:[%s218 + $0x2c] sm:$0xf]
      %v270 = vld [vmem:[%s218 + $0x30] sm:$0xf]
      %v271 = vld [vmem:[%s218 + $0x34] sm:$0xf]
      %v272 = vld [vmem:[%s218 + $0x38] sm:$0xf]
      %v273 = vld [vmem:[%s218 + $0x3c] sm:$0xf]
      %v282 = vunpack.c.l.b16 %v250
      %v283 = vunpack.c.l.b16 %v251
      %v284 = vunpack.c.l.b16 %v252
      %v285 = vunpack.c.l.b16 %v253
      %v286 = vunpack.c.l.b16 %v254
      %v287 = vunpack.c.l.b16 %v255
      %v288 = vunpack.c.l.b16 %v256
      %v289 = vunpack.c.l.b16 %v257
      %v290 = vpack.c.b16 %v283, %v282
      %v291 = vpack.c.b16 %v285, %v284
      %v292 = vpack.c.b16 %v287, %v286
      %v293 = vpack.c.b16 %v289, %v288
      %v314 = vunpack.c.l.b16 %v258
      %v315 = vunpack.c.l.b16 %v259
      %v316 = vunpack.c.l.b16 %v260
      %v317 = vunpack.c.l.b16 %v261
      %v318 = vunpack.c.l.b16 %v262
      %v319 = vunpack.c.l.b16 %v263
      %v320 = vunpack.c.l.b16 %v264
      %v321 = vunpack.c.l.b16 %v265
      %v322 = vunpack.c.l.b16 %v266
      %v323 = vunpack.c.l.b16 %v267
      %v324 = vunpack.c.l.b16 %v268
      %v325 = vunpack.c.l.b16 %v269
      %v326 = vunpack.c.l.b16 %v270
      %v327 = vunpack.c.l.b16 %v271
      %v328 = vunpack.c.l.b16 %v272
      %v329 = vunpack.c.l.b16 %v273
      %v330 = vpack.c.b16 %v315, %v314
      %v331 = vpack.c.b16 %v317, %v316
      %v332 = vpack.c.b16 %v319, %v318
      %v333 = vpack.c.b16 %v321, %v320
      %v334 = vpack.c.b16 %v323, %v322
      %v335 = vpack.c.b16 %v325, %v324
      %v336 = vpack.c.b16 %v327, %v326
      %v337 = vpack.c.b16 %v329, %v328
      %346 = vmatpush.bf16.msra.mxu0 %v337
      %347 = vmatpush.bf16.msra.mxu0 %v336
      %348 = vmatpush.bf16.msra.mxu0 %v335
      %349 = vmatpush.bf16.msra.mxu0 %v334
      %350 = vmatpush.bf16.msra.mxu0 %v333
      %351 = vmatpush.bf16.msra.mxu0 %v332
      %352 = vmatpush.bf16.msra.mxu0 %v331
      %353 = vmatpush.bf16.msra.mxu0 %v330
      %354 = vmatmul.bf16.gmra.mxu0 %v290
      %v355 = vpop.f32.mrf.mxu0
      %v356 = vadd.f32 0.0, %v355
      %v357 = vpop.f32.mrf.mxu0
      %v358 = vadd.f32 0.0, %v357
      %359 = vmatmul.bf16.gmra.mxu0 %v291
      %v360 = vpop.f32.mrf.mxu0
      %v361 = vadd.f32 0.0, %v360
      %v362 = vpop.f32.mrf.mxu0
      %v363 = vadd.f32 0.0, %v362
      %364 = vmatmul.bf16.gmra.mxu0 %v292
      %v365 = vpop.f32.mrf.mxu0
      %v366 = vadd.f32 0.0, %v365
      %v367 = vpop.f32.mrf.mxu0
      %v368 = vadd.f32 0.0, %v367
      %369 = vmatmul.bf16.gmra.mxu0 %v293
      %v370 = vpop.f32.mrf.mxu0
      %v371 = vadd.f32 0.0, %v370
      %v372 = vpop.f32.mrf.mxu0
      %v373 = vadd.f32 0.0, %v372
      %374 = vdwg.mxu0
      %v375 = vadd.f32 %v242, %v356
      %v376 = vadd.f32 %v243, %v358
      %v377 = vadd.f32 %v244, %v361
      %v378 = vadd.f32 %v245, %v363
      %v379 = vadd.f32 %v246, %v366
      %v380 = vadd.f32 %v247, %v368
      %v381 = vadd.f32 %v248, %v371
      %v382 = vadd.f32 %v249, %v373
      %383 = vst [vmem:[%s224] sm:$0xff] %v375
      %384 = vst [vmem:[%s224 + $0x8] sm:$0xff] %v376
      %385 = vst [vmem:[%s224 + $0x10] sm:$0xff] %v377
      %386 = vst [vmem:[%s224 + $0x18] sm:$0xff] %v378
      %387 = vst [vmem:[%s224 + $0x20] sm:$0xff] %v379
      %388 = vst [vmem:[%s224 + $0x28] sm:$0xff] %v380
      %389 = vst [vmem:[%s224 + $0x30] sm:$0xff] %v381
      %390 = vst [vmem:[%s224 + $0x38] sm:$0xff] %v382
      // Predicated region
      $region33: #{basic_block_forward.4} parent=27 // pred_check
        %p391 = pneg %p230
      $region34: #{basic_block_forward.4} parent=27 // pred_check_branch
        %393 = sbr.rel (%p391) target = $region36
      $region35: #{basic_block_forward.4} parent=27 // pred_region
        %v394 = vld [vmem:[%s224] sm:$0xff]
        %v395 = vld [vmem:[%s224 + $0x8] sm:$0xff]
        %v396 = vld [vmem:[%s224 + $0x10] sm:$0xff]
        %v397 = vld [vmem:[%s224 + $0x18] sm:$0xff]
        %v398 = vld [vmem:[%s224 + $0x20] sm:$0xff]
        %v399 = vld [vmem:[%s224 + $0x28] sm:$0xff]
        %v400 = vld [vmem:[%s224 + $0x30] sm:$0xff]
        %v401 = vld [vmem:[%s224 + $0x38] sm:$0xff]
        %v402 = vadd.f32 %v394, %v395
        %v403 = vadd.f32 %v402, %v396
        %v404 = vadd.f32 %v403, %v397
        %v405 = vadd.f32 %v404, %v398
        %v406 = vadd.f32 %v405, %v399
        %v407 = vadd.f32 %v406, %v400
        %v408 = vadd.f32 %v407, %v401
        %v409 = vrot.slane %v408, 4
        %v410 = vadd.f32 %v408, %v409
        %v411 = vrot.slane %v410, 2
        %v412 = vadd.f32 %v410, %v411
        %v413 = vrot.slane %v412, 1
        %v414 = vadd.f32 %v412, %v413
        %v415 = vmul.f32 %v394, %v394
        %v416 = vmul.f32 %v395, %v395
        %v417 = vmul.f32 %v396, %v396
        %v418 = vmul.f32 %v397, %v397
        %v419 = vmul.f32 %v398, %v398
        %v420 = vmul.f32 %v399, %v399
        %v421 = vmul.f32 %v400, %v400
        %v422 = vmul.f32 %v401, %v401
        %v423 = vadd.f32 %v415, %v416
        %v424 = vadd.f32 %v423, %v417
        %v425 = vadd.f32 %v424, %v418
        %v426 = vadd.f32 %v425, %v419
        %v427 = vadd.f32 %v426, %v420
        %v428 = vadd.f32 %v427, %v421
        %v429 = vadd.f32 %v428, %v422
        %v430 = vrot.slane %v429, 4
        %v431 = vadd.f32 %v429, %v430
        %v432 = vrot.slane %v431, 2
        %v433 = vadd.f32 %v431, %v432
        %v434 = vrot.slane %v433, 1
        %v435 = vadd.f32 %v433, %v434
        %vm436 = vcmask 1040384
        %v437 = vsel %vm436, %v414, %v435
        %vm438 = vcmask 1041408
        %v439 = vsel %vm438, %v437, 0.0
        %440 = vst [vmem:[%s229] sm:$0xff] %v439
      $region36: #{basic_block_forward.4} parent=27 // pred_fallthru
        _
      %s441 = smul.u32 8, %s19
      %p442 = scmp.lt.s32.totalorder %s441, 15
      %s443 = scalar_select %p442, %s441, 15
      %s444 = smul.addr %s443, 8
      %s445 = scalar_lea.vmem %s2, %s444
      %p446 = scmp.lt.s32.totalorder %s19, 1
      %s447 = scalar_select %p446, %s19, 1
      %s448 = smul.addr %s447, 8
      %s449 = scalar_lea.vmem %s3, %s448
      // Predicated region
      $region37: #{basic_block_forward.4} parent=27 // pred_check
        %p450 = pneg %p99
      $region38: #{basic_block_forward.4} parent=27 // pred_check_branch
        %452 = sbr.rel (%p450) target = $region40
      $region39: #{basic_block_forward.4} parent=27 // pred_region
        %s453 = smul.u32 8, %s19
      $region40: #{basic_block_forward.4} parent=27 // pred_fallthru
        _
      // Predicated region
      $region41: #{basic_block_forward.4} parent=27 // pred_check
        %p454 = pneg %p125
      $region42: #{basic_block_forward.4} parent=27 // pred_check_branch
        %456 = sbr.rel (%p454) target = $region44
      $region43: #{basic_block_forward.4} parent=27 // pred_region
        _
      $region44: #{basic_block_forward.4} parent=27 // pred_fallthru
        _
    $region28: #{basic_block_forward.4} parent=5 // pred_fallthru
      _
    %p457 = scmp.le.s32.totalorder 2, %s10
    // Predicated region
    $region45: #{basic_block_forward.4} parent=5 // pred_check
      %p458 = pneg %p457
    $region46: #{basic_block_forward.4} parent=5 // pred_check_branch
      %460 = sbr.rel (%p458) target = $region48
    $region47: #{basic_block_forward.4} parent=5 // pred_region
      %s461 = ssub.s32 %s10, 2
      // Predicated region
      $region49: #{basic_block_forward.4} parent=47 // pred_check
        %p462 = pneg %p105
      $region50: #{basic_block_forward.4} parent=47 // pred_check_branch
        %464 = sbr.rel (%p462) target = $region52
      $region51: #{basic_block_forward.4} parent=47 // pred_region
        %s465 = smul.u32 8, %s21
        %p466 = scmp.lt.s32.totalorder %s465, 15
        %s467 = scalar_select %p466, %s465, 15
        %s468 = smul.addr %s467, 8
        %s469 = scalar_lea.vmem %s2, %s468
      $region52: #{basic_block_forward.4} parent=47 // pred_fallthru
        _
      // Predicated region
      $region53: #{basic_block_forward.4} parent=47 // pred_check
        %p470 = pneg %p131
      $region54: #{basic_block_forward.4} parent=47 // pred_check_branch
        %472 = sbr.rel (%p470) target = $region56
      $region55: #{basic_block_forward.4} parent=47 // pred_region
        %p473 = scmp.lt.s32.totalorder %s21, 1
        %s474 = scalar_select %p473, %s21, 1
        %s475 = smul.addr %s474, 8
        %s476 = scalar_lea.vmem %s3, %s475
      $region56: #{basic_block_forward.4} parent=47 // pred_fallthru
        _
    $region48: #{basic_block_forward.4} parent=5 // pred_fallthru
      _
  $region6: #{basic_block_forward.4} parent=0 // loop_footer
    %s14 = sadd.s32 1, %s10
  $region7: #{basic_block_forward.4} parent=0 // loop_footer_branch
    %9 = sbr.rel target = $region3
  $region8: #{basic_block_forward.4} parent=0 // loop_exit
    _

// kernel: basic_block_forward.7
$region0: #{basic_block_forward.7}
  #allocation0 [shape = 'u32[]', space=smem, size = 0x4, offset = 0x4, fixed_abs, tag = 'smem constant byte address 0x4 - core index']
  #allocation1 [shape = 'u32[72,128]{1,0:T(1,128)}', space=vmem, size = 0x9000, scoped, tag = 'internal scratch']
  %s0 = inlined_call_operand.vmem [shape: f32[128,128], index: 0, kind: input, shape index: {}]
  %s1 = inlined_call_operand.vmem [shape: f32[1,128], index: 1, kind: input, shape index: {}]
  %s2 = inlined_call_operand.vmem [shape: f32[1,128], index: 2, kind: input, shape index: {}]
  %s3 = inlined_call_operand.vmem [shape: f32[128,128], index: 3, kind: input, shape index: {}]
  %s4 = inlined_call_operand.vmem [shape: f32[1,128], index: 4, kind: input, shape index: {}]
  %s5 = inlined_call_operand.vmem [shape: f32[1,128], index: 5, kind: input, shape index: {}]
  %s6 = inlined_call_operand.vmem [shape: f32[128,128], index: 6, kind: output, shape index: {}]
  %s7 = sld [smem:[#allocation0]]
  $region34: #{basic_block_forward.7} parent=0
    _
  %s9 = ssub.s32 1, %s7
  %s10 = scalar_select 0, %s9, %s7
  // Predicated region
  $region2: #{basic_block_forward.7} parent=0 // pred_check
    _
  $region3: #{basic_block_forward.7} parent=0 // pred_check_branch
    %12 = sbr.rel (0) target = $region5
  $region4: #{basic_block_forward.7} parent=0 // pred_region
    _
  $region5: #{basic_block_forward.7} parent=0 // pred_fallthru
    _
  // Predicated region
  $region6: #{basic_block_forward.7} parent=0 // pred_check
    _
  $region7: #{basic_block_forward.7} parent=0 // pred_check_branch
    %14 = sbr.rel (0) target = $region9
  $region8: #{basic_block_forward.7} parent=0 // pred_region
    _
  $region9: #{basic_block_forward.7} parent=0 // pred_fallthru
    _
  // Predicated region
  $region10: #{basic_block_forward.7} parent=0 // pred_check
    _
  $region11: #{basic_block_forward.7} parent=0 // pred_check_branch
    %16 = sbr.rel (0) target = $region13
  $region12: #{basic_block_forward.7} parent=0 // pred_region
    _
  $region13: #{basic_block_forward.7} parent=0 // pred_fallthru
    _
  // Predicated region
  $region14: #{basic_block_forward.7} parent=0 // pred_check
    _
  $region15: #{basic_block_forward.7} parent=0 // pred_check_branch
    %18 = sbr.rel (0) target = $region17
  $region16: #{basic_block_forward.7} parent=0 // pred_region
    _
  $region17: #{basic_block_forward.7} parent=0 // pred_fallthru
    _
  // Predicated region
  $region18: #{basic_block_forward.7} parent=0 // pred_check
    _
  $region19: #{basic_block_forward.7} parent=0 // pred_check_branch
    %20 = sbr.rel (0) target = $region21
  $region20: #{basic_block_forward.7} parent=0 // pred_region
    _
  $region21: #{basic_block_forward.7} parent=0 // pred_fallthru
    _
  // Predicated region
  $region22: #{basic_block_forward.7} parent=0 // pred_check
    _
  $region23: #{basic_block_forward.7} parent=0 // pred_check_branch
    %22 = sbr.rel (0) target = $region25
  $region24: #{basic_block_forward.7} parent=0 // pred_region
    _
  $region25: #{basic_block_forward.7} parent=0 // pred_fallthru
    _
  %v23 = vld [vmem:[%s0] sm:$0xff]
  %v24 = vld [vmem:[%s0 + $0x8] sm:$0xff]
  %v25 = vld [vmem:[%s0 + $0x10] sm:$0xff]
  %v26 = vld [vmem:[%s0 + $0x18] sm:$0xff]
  %v27 = vld [vmem:[%s0 + $0x20] sm:$0xff]
  %v28 = vld [vmem:[%s0 + $0x28] sm:$0xff]
  %v29 = vld [vmem:[%s0 + $0x30] sm:$0xff]
  %v30 = vld [vmem:[%s0 + $0x38] sm:$0xff]
  %v31 = vld [vmem:[%s0 + $0x40] sm:$0xff]
  %v32 = vld [vmem:[%s0 + $0x48] sm:$0xff]
  %v33 = vld [vmem:[%s0 + $0x50] sm:$0xff]
  %v34 = vld [vmem:[%s0 + $0x58] sm:$0xff]
  %v35 = vld [vmem:[%s0 + $0x60] sm:$0xff]
  %v36 = vld [vmem:[%s0 + $0x68] sm:$0xff]
  %v37 = vld [vmem:[%s0 + $0x70] sm:$0xff]
  %v38 = vld [vmem:[%s0 + $0x78] sm:$0xff]
  %v39 = vld [vmem:[%s1] sm:$0x1]
  %v41 = vperm.slane %v39, 0
  %v43 = vmul.f32 %v23, %v41
  %v44 = vmul.f32 %v24, %v41
  %v45 = vmul.f32 %v25, %v41
  %v46 = vmul.f32 %v26, %v41
  %v47 = vmul.f32 %v27, %v41
  %v48 = vmul.f32 %v28, %v41
  %v49 = vmul.f32 %v29, %v41
  %v50 = vmul.f32 %v30, %v41
  %v51 = vmul.f32 %v31, %v41
  %v52 = vmul.f32 %v32, %v41
  %v53 = vmul.f32 %v33, %v41
  %v54 = vmul.f32 %v34, %v41
  %v55 = vmul.f32 %v35, %v41
  %v56 = vmul.f32 %v36, %v41
  %v57 = vmul.f32 %v37, %v41
  %v58 = vmul.f32 %v38, %v41
  %v59 = vld [vmem:[%s2] sm:$0x1]
  %v61 = vperm.slane %v59, 0
  %v63 = vadd.f32 %v43, %v61
  %v64 = vadd.f32 %v44, %v61
  %v65 = vadd.f32 %v45, %v61
  %v66 = vadd.f32 %v46, %v61
  %v67 = vadd.f32 %v47, %v61
  %v68 = vadd.f32 %v48, %v61
  %v69 = vadd.f32 %v49, %v61
  %v70 = vadd.f32 %v50, %v61
  %v71 = vadd.f32 %v51, %v61
  %v72 = vadd.f32 %v52, %v61
  %v73 = vadd.f32 %v53, %v61
  %v74 = vadd.f32 %v54, %v61
  %v75 = vadd.f32 %v55, %v61
  %v76 = vadd.f32 %v56, %v61
  %v77 = vadd.f32 %v57, %v61
  %v78 = vadd.f32 %v58, %v61
  %v79 = vld [vmem:[%s3] sm:$0xff]
  %v80 = vld [vmem:[%s3 + $0x8] sm:$0xff]
  %v81 = vld [vmem:[%s3 + $0x10] sm:$0xff]
  %v82 = vld [vmem:[%s3 + $0x18] sm:$0xff]
  %v83 = vld [vmem:[%s3 + $0x20] sm:$0xff]
  %v84 = vld [vmem:[%s3 + $0x28] sm:$0xff]
  %v85 = vld [vmem:[%s3 + $0x30] sm:$0xff]
  %v86 = vld [vmem:[%s3 + $0x38] sm:$0xff]
  %v87 = vld [vmem:[%s3 + $0x40] sm:$0xff]
  %v88 = vld [vmem:[%s3 + $0x48] sm:$0xff]
  %v89 = vld [vmem:[%s3 + $0x50] sm:$0xff]
  %v90 = vld [vmem:[%s3 + $0x58] sm:$0xff]
  %v91 = vld [vmem:[%s3 + $0x60] sm:$0xff]
  %v92 = vld [vmem:[%s3 + $0x68] sm:$0xff]
  %v93 = vld [vmem:[%s3 + $0x70] sm:$0xff]
  %v94 = vld [vmem:[%s3 + $0x78] sm:$0xff]
  %v95 = vld [vmem:[%s4] sm:$0x1]
  %v97 = vperm.slane %v95, 0
  %v99 = vmul.f32 %v79, %v97
  %v100 = vmul.f32 %v80, %v97
  %v101 = vmul.f32 %v81, %v97
  %v102 = vmul.f32 %v82, %v97
  %v103 = vmul.f32 %v83, %v97
  %v104 = vmul.f32 %v84, %v97
  %v105 = vmul.f32 %v85, %v97
  %v106 = vmul.f32 %v86, %v97
  %v107 = vmul.f32 %v87, %v97
  %v108 = vmul.f32 %v88, %v97
  %v109 = vmul.f32 %v89, %v97
  %v110 = vmul.f32 %v90, %v97
  %v111 = vmul.f32 %v91, %v97
  %v112 = vmul.f32 %v92, %v97
  %v113 = vmul.f32 %v93, %v97
  %v114 = vmul.f32 %v94, %v97
  %v115 = vld [vmem:[%s5] sm:$0x1]
  %v117 = vperm.slane %v115, 0
  %v119 = vadd.f32 %v99, %v117
  %v120 = vadd.f32 %v100, %v117
  %v121 = vadd.f32 %v101, %v117
  %v122 = vadd.f32 %v102, %v117
  %v123 = vadd.f32 %v103, %v117
  %v124 = vadd.f32 %v104, %v117
  %v125 = vadd.f32 %v105, %v117
  %v126 = vadd.f32 %v106, %v117
  %v127 = vadd.f32 %v107, %v117
  %v128 = vadd.f32 %v108, %v117
  %v129 = vadd.f32 %v109, %v117
  %v130 = vadd.f32 %v110, %v117
  %v131 = vadd.f32 %v111, %v117
  %v132 = vadd.f32 %v112, %v117
  %v133 = vadd.f32 %v113, %v117
  %v134 = vadd.f32 %v114, %v117
  %v135 = vadd.f32 %v63, %v119
  %v136 = vadd.f32 %v64, %v120
  %v137 = vadd.f32 %v65, %v121
  %v138 = vadd.f32 %v66, %v122
  %v139 = vadd.f32 %v67, %v123
  %v140 = vadd.f32 %v68, %v124
  %v141 = vadd.f32 %v69, %v125
  %v142 = vadd.f32 %v70, %v126
  %v143 = vadd.f32 %v71, %v127
  %v144 = vadd.f32 %v72, %v128
  %v145 = vadd.f32 %v73, %v129
  %v146 = vadd.f32 %v74, %v130
  %v147 = vadd.f32 %v75, %v131
  %v148 = vadd.f32 %v76, %v132
  %v149 = vadd.f32 %v77, %v133
  %v150 = vadd.f32 %v78, %v134
  %v151 = vmax.f32 %v135, 0.0
  %v152 = vmax.f32 %v136, 0.0
  %v153 = vmax.f32 %v137, 0.0
  %v154 = vmax.f32 %v138, 0.0
  %v155 = vmax.f32 %v139, 0.0
  %v156 = vmax.f32 %v140, 0.0
  %v157 = vmax.f32 %v141, 0.0
  %v158 = vmax.f32 %v142, 0.0
  %v159 = vmax.f32 %v143, 0.0
  %v160 = vmax.f32 %v144, 0.0
  %v161 = vmax.f32 %v145, 0.0
  %v162 = vmax.f32 %v146, 0.0
  %v163 = vmax.f32 %v147, 0.0
  %v164 = vmax.f32 %v148, 0.0
  %v165 = vmax.f32 %v149, 0.0
  %v166 = vmax.f32 %v150, 0.0
  %167 = vst [vmem:[%s6] sm:$0xff] %v151
  %168 = vst [vmem:[%s6 + $0x8] sm:$0xff] %v152
  %169 = vst [vmem:[%s6 + $0x10] sm:$0xff] %v153
  %170 = vst [vmem:[%s6 + $0x18] sm:$0xff] %v154
  %171 = vst [vmem:[%s6 + $0x20] sm:$0xff] %v155
  %172 = vst [vmem:[%s6 + $0x28] sm:$0xff] %v156
  %173 = vst [vmem:[%s6 + $0x30] sm:$0xff] %v157
  %174 = vst [vmem:[%s6 + $0x38] sm:$0xff] %v158
  %175 = vst [vmem:[%s6 + $0x40] sm:$0xff] %v159
  %176 = vst [vmem:[%s6 + $0x48] sm:$0xff] %v160
  %177 = vst [vmem:[%s6 + $0x50] sm:$0xff] %v161
  %178 = vst [vmem:[%s6 + $0x58] sm:$0xff] %v162
  %179 = vst [vmem:[%s6 + $0x60] sm:$0xff] %v163
  %180 = vst [vmem:[%s6 + $0x68] sm:$0xff] %v164
  %181 = vst [vmem:[%s6 + $0x70] sm:$0xff] %v165
  %182 = vst [vmem:[%s6 + $0x78] sm:$0xff] %v166
  // Predicated region
  $region26: #{basic_block_forward.7} parent=0 // pred_check
    _
  $region27: #{basic_block_forward.7} parent=0 // pred_check_branch
    %184 = sbr.rel (0) target = $region29
  $region28: #{basic_block_forward.7} parent=0 // pred_region
    _
  $region29: #{basic_block_forward.7} parent=0 // pred_fallthru
    _
  // Predicated region
  $region30: #{basic_block_forward.7} parent=0 // pred_check
    _
  $region31: #{basic_block_forward.7} parent=0 // pred_check_branch
    %186 = sbr.rel (0) target = $region33
  $region32: #{basic_block_forward.7} parent=0 // pred_region
    _
  $region33: #{basic_block_forward.7} parent=0 // pred_fallthru
    _

// kernel: basic_block_forward.6
$region0: #{basic_block_forward.6}
  #allocation0 [shape = 'u32[]', space=smem, size = 0x4, offset = 0x4, fixed_abs, tag = 'smem constant byte address 0x4 - core index']
  #allocation1 [shape = 'u32[72,128]{1,0:T(1,128)}', space=vmem, size = 0x9000, scoped, tag = 'internal scratch']
  %s0 = inlined_call_operand.vmem [shape: bf16[128,128], index: 0, kind: input, shape index: {}]
  %s1 = inlined_call_operand.vmem [shape: bf16[128,128], index: 1, kind: input, shape index: {}]
  %s2 = inlined_call_operand.vmem [shape: bf16[128,128], index: 2, kind: input, shape index: {}]
  %s3 = inlined_call_operand.vmem [shape: bf16[128,128], index: 3, kind: input, shape index: {}]
  %s4 = inlined_call_operand.vmem [shape: f32[128,128], index: 4, kind: output, shape index: {0}]
  %s5 = inlined_call_operand.vmem [shape: f32[2,8,128], index: 5, kind: output, shape index: {1}]
  %s6 = inlined_call_operand.vmem [shape: f32[128,128], index: 6, kind: output, shape index: {2}]
  %s7 = inlined_call_operand.vmem [shape: f32[2,8,128], index: 7, kind: output, shape index: {3}]
  %8 = xla_tuple %s4, %s5, %s6, %s7
  %s9 = sld [smem:[#allocation0]]
  $region81: #{basic_block_forward.6} parent=0
    _
  %s11 = ssub.s32 1, %s9
  %s12 = scalar_select 0, %s11, %s9
  loop: start=0, step=1, limit=4
  $region2: #{basic_block_forward.6} parent=0 // loop_pre_header
    _
  $region3: #{basic_block_forward.6} parent=0 // loop_header
    %s14 = sphi 0, %s18
    %p15 = scmp.ge.s32.totalorder %s14, 4
    %s21 = sphi 0, %s33
    %s22 = sphi 0, %s29
    %s23 = sphi 0, %s21
    %s24 = sphi 0, %s22
    %s25 = sphi 0, %s23
    %s26 = sphi 0, %s24
    %s38 = sphi 0, %s40
    %s41 = sphi 0, %s38
    %s42 = sphi 0, %s41
    %s58 = sphi 0, %s42
    %s64 = sphi 0, %s66
    %s67 = sphi 0, %s64
    %s68 = sphi 0, %s67
    %s84 = sphi 0, %s68
    %s90 = sphi 0, %s92
    %s93 = sphi 0, %s90
    %s94 = sphi 0, %s93
    %s110 = sphi 0, %s94
    %s114 = sphi 0, %s114
    %s116 = sphi 0, %s114
    %s117 = sphi 0, %s116
    %s131 = sphi 0, %s117
    %s137 = sphi 0, %s139
    %s140 = sphi 0, %s137
    %s141 = sphi 0, %s140
    %s157 = sphi 0, %s141
    %s163 = sphi 0, %s165
    %s166 = sphi 0, %s163
    %s167 = sphi 0, %s166
    %s183 = sphi 0, %s167
    %s189 = sphi 0, %s191
    %s192 = sphi 0, %s189
    %s193 = sphi 0, %s192
    %s209 = sphi 0, %s193
    %s215 = sphi 0, %s217
    %s218 = sphi 0, %s215
    %s219 = sphi 0, %s218
    %s235 = sphi 0, %s219
  $region4: #{basic_block_forward.6} parent=0 // loop_header_branch
    %17 = sbr.rel (%p15) target = $region8
  $region5: #{basic_block_forward.6} parent=0 // loop_body
    %s19 = ssub.s32 %s14, 1
    %s20 = ssub.s32 %s14, 2
    %s27 = sadd.s32 1, %s22
    %p28 = scmp.ge.s32.totalorder %s27, 1
    %s29 = scalar_select %p28, 0, %s27
    %s30 = sadd.s32 1, %s21
    %s31 = scalar_select %p28, %s30, %s21
    %p32 = scmp.ge.s32.totalorder %s31, 2
    %s33 = scalar_select %p32, 0, %s31
    %s34 = ssub.s32 %s21, %s33
    %s35 = ssub.s32 %s22, %s29
    %s36 = sor.u32 %s34, %s35
    %p37 = scmp.eq.s32.totalorder %s36, 0
    %s39 = sadd.s32 %s38, 1
    %s40 = scalar_select %p37, %s38, %s39
    %p43 = pneg %p37
    %p44 = scmp.eq.s32.totalorder %s14, 1
    %p45 = por %p43, %p44
    %p46 = scmp.ne.s32.totalorder %s38, %s41
    %p47 = scmp.eq.s32.totalorder %s14, 0
    %p48 = por %p46, %p47
    %p49 = scmp.ne.s32.totalorder %s38, %s41
    %p50 = scmp.eq.s32.totalorder %s19, 1
    %p51 = por %p49, %p50
    %p52 = scmp.ne.s32.totalorder %s41, %s42
    %p53 = scmp.eq.s32.totalorder %s19, 0
    %p54 = por %p52, %p53
    %p55 = scmp.ne.s32.totalorder %s41, %s42
    %p56 = scmp.eq.s32.totalorder %s20, 1
    %p57 = por %p55, %p56
    %p59 = scmp.ne.s32.totalorder %s42, %s58
    %p60 = scmp.eq.s32.totalorder %s20, 0
    %p61 = por %p59, %p60
    %s62 = ssub.s32 %s22, %s29
    %p63 = scmp.eq.s32.totalorder %s62, 0
    %s65 = sadd.s32 %s64, 1
    %s66 = scalar_select %p63, %s64, %s65
    %p69 = pneg %p63
    %p70 = scmp.eq.s32.totalorder %s14, 1
    %p71 = por %p69, %p70
    %p72 = scmp.ne.s32.totalorder %s64, %s67
    %p73 = scmp.eq.s32.totalorder %s14, 0
    %p74 = por %p72, %p73
    %p75 = scmp.ne.s32.totalorder %s64, %s67
    %p76 = scmp.eq.s32.totalorder %s19, 1
    %p77 = por %p75, %p76
    %p78 = scmp.ne.s32.totalorder %s67, %s68
    %p79 = scmp.eq.s32.totalorder %s19, 0
    %p80 = por %p78, %p79
    %p81 = scmp.ne.s32.totalorder %s67, %s68
    %p82 = scmp.eq.s32.totalorder %s20, 1
    %p83 = por %p81, %p82
    %p85 = scmp.ne.s32.totalorder %s68, %s84
    %p86 = scmp.eq.s32.totalorder %s20, 0
    %p87 = por %p85, %p86
    %s88 = ssub.s32 %s21, %s33
    %p89 = scmp.eq.s32.totalorder %s88, 0
    %s91 = sadd.s32 %s90, 1
    %s92 = scalar_select %p89, %s90, %s91
    %p95 = pneg %p89
    %p96 = scmp.eq.s32.totalorder %s14, 1
    %p97 = por %p95, %p96
    %p98 = scmp.ne.s32.totalorder %s90, %s93
    %p99 = scmp.eq.s32.totalorder %s14, 0
    %p100 = por %p98, %p99
    %p101 = scmp.ne.s32.totalorder %s90, %s93
    %p102 = scmp.eq.s32.totalorder %s19, 1
    %p103 = por %p101, %p102
    %p104 = scmp.ne.s32.totalorder %s93, %s94
    %p105 = scmp.eq.s32.totalorder %s19, 0
    %p106 = por %p104, %p105
    %p107 = scmp.ne.s32.totalorder %s93, %s94
    %p108 = scmp.eq.s32.totalorder %s20, 1
    %p109 = por %p107, %p108
    %p111 = scmp.ne.s32.totalorder %s94, %s110
    %p112 = scmp.eq.s32.totalorder %s20, 0
    %p113 = por %p111, %p112
    %s115 = sadd.s32 %s114, 1
    %p118 = scmp.eq.s32.totalorder %s14, 1
    %p119 = scmp.ne.s32.totalorder %s114, %s116
    %p120 = scmp.eq.s32.totalorder %s14, 0
    %p121 = por %p119, %p120
    %p122 = scmp.ne.s32.totalorder %s114, %s116
    %p123 = scmp.eq.s32.totalorder %s19, 1
    %p124 = por %p122, %p123
    %p125 = scmp.ne.s32.totalorder %s116, %s117
    %p126 = scmp.eq.s32.totalorder %s19, 0
    %p127 = por %p125, %p126
    %p128 = scmp.ne.s32.totalorder %s116, %s117
    %p129 = scmp.eq.s32.totalorder %s20, 1
    %p130 = por %p128, %p129
    %p132 = scmp.ne.s32.totalorder %s117, %s131
    %p133 = scmp.eq.s32.totalorder %s20, 0
    %p134 = por %p132, %p133
    %s135 = ssub.s32 %s21, %s33
    %p136 = scmp.eq.s32.totalorder %s135, 0
    %s138 = sadd.s32 %s137, 1
    %s139 = scalar_select %p136, %s137, %s138
    %p142 = pneg %p136
    %p143 = scmp.eq.s32.totalorder %s14, 1
    %p144 = por %p142, %p143
    %p145 = scmp.ne.s32.totalorder %s137, %s140
    %p146 = scmp.eq.s32.totalorder %s14, 0
    %p147 = por %p145, %p146
    %p148 = scmp.ne.s32.totalorder %s137, %s140
    %p149 = scmp.eq.s32.totalorder %s19, 1
    %p150 = por %p148, %p149
    %p151 = scmp.ne.s32.totalorder %s140, %s141
    %p152 = scmp.eq.s32.totalorder %s19, 0
    %p153 = por %p151, %p152
    %p154 = scmp.ne.s32.totalorder %s140, %s141
    %p155 = scmp.eq.s32.totalorder %s20, 1
    %p156 = por %p154, %p155
    %p158 = scmp.ne.s32.totalorder %s141, %s157
    %p159 = scmp.eq.s32.totalorder %s20, 0
    %p160 = por %p158, %p159
    %s161 = ssub.s32 %s21, %s33
    %p162 = scmp.eq.s32.totalorder %s161, 0
    %s164 = sadd.s32 %s163, 1
    %s165 = scalar_select %p162, %s163, %s164
    %p168 = pneg %p162
    %p169 = scmp.eq.s32.totalorder %s14, 1
    %p170 = por %p168, %p169
    %p171 = scmp.ne.s32.totalorder %s163, %s166
    %p172 = scmp.eq.s32.totalorder %s14, 0
    %p173 = por %p171, %p172
    %p174 = scmp.ne.s32.totalorder %s163, %s166
    %p175 = scmp.eq.s32.totalorder %s19, 1
    %p176 = por %p174, %p175
    %p177 = scmp.ne.s32.totalorder %s166, %s167
    %p178 = scmp.eq.s32.totalorder %s19, 0
    %p179 = por %p177, %p178
    %p180 = scmp.ne.s32.totalorder %s166, %s167
    %p181 = scmp.eq.s32.totalorder %s20, 1
    %p182 = por %p180, %p181
    %p184 = scmp.ne.s32.totalorder %s167, %s183
    %p185 = scmp.eq.s32.totalorder %s20, 0
    %p186 = por %p184, %p185
    %s187 = ssub.s32 %s21, %s33
    %p188 = scmp.eq.s32.totalorder %s187, 0
    %s190 = sadd.s32 %s189, 1
    %s191 = scalar_select %p188, %s189, %s190
    %p194 = pneg %p188
    %p195 = scmp.eq.s32.totalorder %s14, 1
    %p196 = por %p194, %p195
    %p197 = scmp.ne.s32.totalorder %s189, %s192
    %p198 = scmp.eq.s32.totalorder %s14, 0
    %p199 = por %p197, %p198
    %p200 = scmp.ne.s32.totalorder %s189, %s192
    %p201 = scmp.eq.s32.totalorder %s19, 1
    %p202 = por %p200, %p201
    %p203 = scmp.ne.s32.totalorder %s192, %s193
    %p204 = scmp.eq.s32.totalorder %s19, 0
    %p205 = por %p203, %p204
    %p206 = scmp.ne.s32.totalorder %s192, %s193
    %p207 = scmp.eq.s32.totalorder %s20, 1
    %p208 = por %p206, %p207
    %p210 = scmp.ne.s32.totalorder %s193, %s209
    %p211 = scmp.eq.s32.totalorder %s20, 0
    %p212 = por %p210, %p211
    %s213 = ssub.s32 %s21, %s33
    %p214 = scmp.eq.s32.totalorder %s213, 0
    %s216 = sadd.s32 %s215, 1
    %s217 = scalar_select %p214, %s215, %s216
    %p220 = pneg %p214
    %p221 = scmp.eq.s32.totalorder %s14, 1
    %p222 = por %p220, %p221
    %p223 = scmp.ne.s32.totalorder %s215, %s218
    %p224 = scmp.eq.s32.totalorder %s14, 0
    %p225 = por %p223, %p224
    %p226 = scmp.ne.s32.totalorder %s215, %s218
    %p227 = scmp.eq.s32.totalorder %s19, 1
    %p228 = por %p226, %p227
    %p229 = scmp.ne.s32.totalorder %s218, %s219
    %p230 = scmp.eq.s32.totalorder %s19, 0
    %p231 = por %p229, %p230
    %p232 = scmp.ne.s32.totalorder %s218, %s219
    %p233 = scmp.eq.s32.totalorder %s20, 1
    %p234 = por %p232, %p233
    %p236 = scmp.ne.s32.totalorder %s219, %s235
    %p237 = scmp.eq.s32.totalorder %s20, 0
    %p238 = por %p236, %p237
    %p239 = scmp.le.s32.totalorder 1, %s14
    %p240 = scmp.lt.s32.totalorder %s14, 3
    %p241 = pnand %p239, %p240
    %p242 = pneg %p241
    // Predicated region
    $region9: #{basic_block_forward.6} parent=5 // pred_check
      _
    $region10: #{basic_block_forward.6} parent=5 // pred_check_branch
      %244 = sbr.rel (%p241) target = $region12
    $region11: #{basic_block_forward.6} parent=5 // pred_region
      %s245 = ssub.s32 %s14, 1
      // Predicated region
      $region13: #{basic_block_forward.6} parent=11 // pred_check
        %p246 = pneg %p80
      $region14: #{basic_block_forward.6} parent=11 // pred_check_branch
        %248 = sbr.rel (%p246) target = $region16
      $region15: #{basic_block_forward.6} parent=11 // pred_region
        %s249 = smul.u32 16, %s24
        %p250 = scmp.lt.s32.totalorder %s249, 15
        %s251 = scalar_select %p250, %s249, 15
        %s252 = smul.addr %s251, 4
        %s253 = scalar_lea.vmem %s1, %s252
        %s254 = smul.u32 16, %s24
      $region16: #{basic_block_forward.6} parent=11 // pred_fallthru
        _
      // Predicated region
      $region17: #{basic_block_forward.6} parent=11 // pred_check
        %p255 = pneg %p127
      $region18: #{basic_block_forward.6} parent=11 // pred_check_branch
        %257 = sbr.rel (%p255) target = $region20
      $region19: #{basic_block_forward.6} parent=11 // pred_region
        _
      $region20: #{basic_block_forward.6} parent=11 // pred_fallthru
        _
    $region12: #{basic_block_forward.6} parent=5 // pred_fallthru
      _
    %p258 = scmp.lt.s32.totalorder %s14, 2
    // Predicated region
    $region21: #{basic_block_forward.6} parent=5 // pred_check
      %p259 = pneg %p258
    $region22: #{basic_block_forward.6} parent=5 // pred_check_branch
      %261 = sbr.rel (%p259) target = $region24
    $region23: #{basic_block_forward.6} parent=5 // pred_region
      // Predicated region
      $region25: #{basic_block_forward.6} parent=23 // pred_check
        %p262 = pneg %p48
      $region26: #{basic_block_forward.6} parent=23 // pred_check_branch
        %264 = sbr.rel (%p262) target = $region28
      $region27: #{basic_block_forward.6} parent=23 // pred_region
        %s265 = smul.u32 8, %s21
        %p266 = scmp.lt.s32.totalorder %s265, 15
        %s267 = scalar_select %p266, %s265, 15
        %p268 = scmp.lt.s32.totalorder %s22, 0
        %s269 = scalar_select %p268, %s22, 0
        %s270 = sadd.s32 %s269, %s267
        %s271 = smul.addr %s270, 4
        %s272 = scalar_lea.vmem %s0, %s271
        %s273 = smul.u32 8, %s21
      $region28: #{basic_block_forward.6} parent=23 // pred_fallthru
        _
      // Predicated region
      $region29: #{basic_block_forward.6} parent=23 // pred_check
        %p274 = pneg %p100
      $region30: #{basic_block_forward.6} parent=23 // pred_check_branch
        %276 = sbr.rel (%p274) target = $region32
      $region31: #{basic_block_forward.6} parent=23 // pred_region
        %s277 = smul.u32 8, %s21
        %p278 = scmp.lt.s32.totalorder %s277, 15
        %s279 = scalar_select %p278, %s277, 15
        %s280 = smul.addr %s279, 4
        %s281 = scalar_lea.vmem %s2, %s280
        %s282 = smul.u32 8, %s21
      $region32: #{basic_block_forward.6} parent=23 // pred_fallthru
        _
    $region24: #{basic_block_forward.6} parent=5 // pred_fallthru
      _
    %p283 = scmp.le.s32.totalorder 1, %s14
    %p284 = scmp.lt.s32.totalorder %s14, 3
    %p285 = pnand %p283, %p284
    %p286 = pneg %p285
    // Predicated region
    $region33: #{basic_block_forward.6} parent=5 // pred_check
      _
    $region34: #{basic_block_forward.6} parent=5 // pred_check_branch
      %288 = sbr.rel (%p285) target = $region36
    $region35: #{basic_block_forward.6} parent=5 // pred_region
      %s289 = ssub.s32 %s14, 1
      %s290 = smul.u32 8, %s23
      %p291 = scmp.lt.s32.totalorder %s290, 15
      %s292 = scalar_select %p291, %s290, 15
      %p293 = scmp.lt.s32.totalorder %s24, 0
      %s294 = scalar_select %p293, %s24, 0
      %s295 = sadd.s32 %s294, %s292
      %s296 = smul.addr %s295, 4
      %s297 = scalar_lea.vmem %s0, %s296
      %p298 = pneg %p54
      %p299 = pneg %p51
      %s300 = smul.u32 16, %s24
      %p301 = scmp.lt.s32.totalorder %s300, 15
      %s302 = scalar_select %p301, %s300, 15
      %s303 = smul.addr %s302, 4
      %s304 = scalar_lea.vmem %s1, %s303
      %p305 = pneg %p80
      %p306 = pneg %p77
      %s307 = smul.u32 8, %s23
      %p308 = scmp.lt.s32.totalorder %s307, 15
      %s309 = scalar_select %p308, %s307, 15
      %s310 = smul.addr %s309, 4
      %s311 = scalar_lea.vmem %s2, %s310
      %p312 = pneg %p106
      %p313 = pneg %p103
      %p314 = pneg %p127
      %p315 = pneg %p124
      %p316 = pneg %p153
      %p317 = pneg %p150
      %s318 = smul.u32 8, %s23
      %p319 = scmp.lt.s32.totalorder %s318, 15
      %s320 = scalar_select %p319, %s318, 15
      %s321 = smul.addr %s320, 8
      %s322 = scalar_lea.vmem %s4, %s321
      %p323 = pneg %p179
      %p324 = pneg %p176
      %p325 = scmp.lt.s32.totalorder %s23, 1
      %s326 = scalar_select %p325, %s23, 1
      %s327 = smul.addr %s326, 8
      %s328 = scalar_lea.vmem %s5, %s327
      %p329 = pneg %p205
      %p330 = pneg %p202
      %s331 = smul.u32 8, %s23
      %p332 = scmp.lt.s32.totalorder %s331, 15
      %s333 = scalar_select %p332, %s331, 15
      %s334 = smul.addr %s333, 8
      %s335 = scalar_lea.vmem %s6, %s334
      %p336 = pneg %p231
      %p337 = pneg %p228
      %p338 = scmp.lt.s32.totalorder %s23, 1
      %s339 = scalar_select %p338, %s23, 1
      %s340 = smul.addr %s339, 8
      %s341 = scalar_lea.vmem %s7, %s340
      %s342 = smul.u32 8, %s23
      %p343 = scmp.lt.s32.totalorder %s342, 15
      %s344 = scalar_select %p343, %s342, 15
      %p345 = scmp.lt.s32.totalorder %s24, 0
      %s346 = scalar_select %p345, %s24, 0
      %s347 = sadd.s32 %s346, %s344
      %s348 = smul.addr %s347, 4
      %s349 = scalar_lea.vmem %s0, %s348
      %s350 = smul.u32 8, %s23
      %s351 = smul.u32 16, %s24
      %p352 = scmp.lt.s32.totalorder %s351, 15
      %s353 = scalar_select %p352, %s351, 15
      %s354 = smul.addr %s353, 4
      %s355 = scalar_lea.vmem %s1, %s354
      %s356 = smul.u32 16, %s24
      %s357 = smul.u32 8, %s23
      %p358 = scmp.lt.s32.totalorder %s357, 15
      %s359 = scalar_select %p358, %s357, 15
      %s360 = smul.addr %s359, 4
      %s361 = scalar_lea.vmem %s2, %s360
      %s362 = smul.u32 8, %s23
      %s363 = smul.u32 8, %s23
      %p364 = scmp.lt.s32.totalorder %s363, 15
      %s365 = scalar_select %p364, %s363, 15
      %s366 = smul.addr %s365, 8
      %s367 = scalar_lea.vmem %s4, %s366
      %s368 = smul.u32 8, %s23
      %p369 = scmp.lt.s32.totalorder %s23, 1
      %s370 = scalar_select %p369, %s23, 1
      %s371 = smul.addr %s370, 8
      %s372 = scalar_lea.vmem %s5, %s371
      %s373 = smul.u32 8, %s23
      %p374 = scmp.lt.s32.totalorder %s373, 15
      %s375 = scalar_select %p374, %s373, 15
      %s376 = smul.addr %s375, 8
      %s377 = scalar_lea.vmem %s6, %s376
      %s378 = smul.u32 8, %s23
      %p379 = scmp.lt.s32.totalorder %s23, 1
      %s380 = scalar_select %p379, %s23, 1
      %s381 = smul.addr %s380, 8
      %s382 = scalar_lea.vmem %s7, %s381
      %p383 = scmp.eq.s32.totalorder %s24, 0
      // Predicated region
      $region37: #{basic_block_forward.6} parent=35 // pred_check
        %p384 = pneg %p383
      $region38: #{basic_block_forward.6} parent=35 // pred_check_branch
        %386 = sbr.rel (%p384) target = $region40
      $region39: #{basic_block_forward.6} parent=35 // pred_region
        %387 = vst [vmem:[%s367] sm:$0xff] 0.0
        %388 = vst [vmem:[%s367 + $0x8] sm:$0xff] 0.0
        %389 = vst [vmem:[%s367 + $0x10] sm:$0xff] 0.0
        %390 = vst [vmem:[%s367 + $0x18] sm:$0xff] 0.0
        %391 = vst [vmem:[%s367 + $0x20] sm:$0xff] 0.0
        %392 = vst [vmem:[%s367 + $0x28] sm:$0xff] 0.0
        %393 = vst [vmem:[%s367 + $0x30] sm:$0xff] 0.0
        %394 = vst [vmem:[%s367 + $0x38] sm:$0xff] 0.0
        %v395 = vld [vmem:[%s361] sm:$0xf]
        %v396 = vld [vmem:[%s361 + $0x4] sm:$0xf]
        %v397 = vld [vmem:[%s361 + $0x8] sm:$0xf]
        %v398 = vld [vmem:[%s361 + $0xc] sm:$0xf]
        %v399 = vld [vmem:[%s361 + $0x10] sm:$0xf]
        %v400 = vld [vmem:[%s361 + $0x14] sm:$0xf]
        %v401 = vld [vmem:[%s361 + $0x18] sm:$0xf]
        %v402 = vld [vmem:[%s361 + $0x1c] sm:$0xf]
        %v403 = vld [vmem:[%s3] sm:$0xf]
        %v404 = vld [vmem:[%s3 + $0x4] sm:$0xf]
        %v405 = vld [vmem:[%s3 + $0x8] sm:$0xf]
        %v406 = vld [vmem:[%s3 + $0xc] sm:$0xf]
        %v407 = vld [vmem:[%s3 + $0x10] sm:$0xf]
        %v408 = vld [vmem:[%s3 + $0x14] sm:$0xf]
        %v409 = vld [vmem:[%s3 + $0x18] sm:$0xf]
        %v410 = vld [vmem:[%s3 + $0x1c] sm:$0xf]
        %v411 = vld [vmem:[%s3 + $0x20] sm:$0xf]
        %v412 = vld [vmem:[%s3 + $0x24] sm:$0xf]
        %v413 = vld [vmem:[%s3 + $0x28] sm:$0xf]
        %v414 = vld [vmem:[%s3 + $0x2c] sm:$0xf]
        %v415 = vld [vmem:[%s3 + $0x30] sm:$0xf]
        %v416 = vld [vmem:[%s3 + $0x34] sm:$0xf]
        %v417 = vld [vmem:[%s3 + $0x38] sm:$0xf]
        %v418 = vld [vmem:[%s3 + $0x3c] sm:$0xf]
        %v427 = vunpack.c.l.b16 %v395
        %v428 = vunpack.c.l.b16 %v396
        %v429 = vunpack.c.l.b16 %v397
        %v430 = vunpack.c.l.b16 %v398
        %v431 = vunpack.c.l.b16 %v399
        %v432 = vunpack.c.l.b16 %v400
        %v433 = vunpack.c.l.b16 %v401
        %v434 = vunpack.c.l.b16 %v402
        %v435 = vpack.c.b16 %v428, %v427
        %v436 = vpack.c.b16 %v430, %v429
        %v437 = vpack.c.b16 %v432, %v431
        %v438 = vpack.c.b16 %v434, %v433
        %v459 = vunpack.c.l.b16 %v403
        %v460 = vunpack.c.l.b16 %v404
        %v461 = vunpack.c.l.b16 %v405
        %v462 = vunpack.c.l.b16 %v406
        %v463 = vunpack.c.l.b16 %v407
        %v464 = vunpack.c.l.b16 %v408
        %v465 = vunpack.c.l.b16 %v409
        %v466 = vunpack.c.l.b16 %v410
        %v467 = vunpack.c.l.b16 %v411
        %v468 = vunpack.c.l.b16 %v412
        %v469 = vunpack.c.l.b16 %v413
        %v470 = vunpack.c.l.b16 %v414
        %v471 = vunpack.c.l.b16 %v415
        %v472 = vunpack.c.l.b16 %v416
        %v473 = vunpack.c.l.b16 %v417
        %v474 = vunpack.c.l.b16 %v418
        %v475 = vpack.c.b16 %v460, %v459
        %v476 = vpack.c.b16 %v462, %v461
        %v477 = vpack.c.b16 %v464, %v463
        %v478 = vpack.c.b16 %v466, %v465
        %v479 = vpack.c.b16 %v468, %v467
        %v480 = vpack.c.b16 %v470, %v469
        %v481 = vpack.c.b16 %v472, %v471
        %v482 = vpack.c.b16 %v474, %v473
        %491 = vmatpush.bf16.msra.mxu0 %v482
        %492 = vmatpush.bf16.msra.mxu0 %v481
        %493 = vmatpush.bf16.msra.mxu0 %v480
        %494 = vmatpush.bf16.msra.mxu0 %v479
        %495 = vmatpush.bf16.msra.mxu0 %v478
        %496 = vmatpush.bf16.msra.mxu0 %v477
        %497 = vmatpush.bf16.msra.mxu0 %v476
        %498 = vmatpush.bf16.msra.mxu0 %v475
        %499 = vmatmul.bf16.gmra.mxu0 %v435
        %v500 = vpop.f32.mrf.mxu0
        %v501 = vadd.f32 0.0, %v500
        %v502 = vpop.f32.mrf.mxu0
        %v503 = vadd.f32 0.0, %v502
        %504 = vmatmul.bf16.gmra.mxu0 %v436
        %v505 = vpop.f32.mrf.mxu0
        %v506 = vadd.f32 0.0, %v505
        %v507 = vpop.f32.mrf.mxu0
        %v508 = vadd.f32 0.0, %v507
        %509 = vmatmul.bf16.gmra.mxu0 %v437
        %v510 = vpop.f32.mrf.mxu0
        %v511 = vadd.f32 0.0, %v510
        %v512 = vpop.f32.mrf.mxu0
        %v513 = vadd.f32 0.0, %v512
        %514 = vmatmul.bf16.gmra.mxu0 %v438
        %v515 = vpop.f32.mrf.mxu0
        %v516 = vadd.f32 0.0, %v515
        %v517 = vpop.f32.mrf.mxu0
        %v518 = vadd.f32 0.0, %v517
        %519 = vdwg.mxu0
        %520 = vst [vmem:[%s377] sm:$0xff] %v501
        %521 = vst [vmem:[%s377 + $0x8] sm:$0xff] %v503
        %522 = vst [vmem:[%s377 + $0x10] sm:$0xff] %v506
        %523 = vst [vmem:[%s377 + $0x18] sm:$0xff] %v508
        %524 = vst [vmem:[%s377 + $0x20] sm:$0xff] %v511
        %525 = vst [vmem:[%s377 + $0x28] sm:$0xff] %v513
        %526 = vst [vmem:[%s377 + $0x30] sm:$0xff] %v516
        %527 = vst [vmem:[%s377 + $0x38] sm:$0xff] %v518
        %v528 = vadd.f32 %v501, %v503
        %v529 = vadd.f32 %v528, %v506
        %v530 = vadd.f32 %v529, %v508
        %v531 = vadd.f32 %v530, %v511
        %v532 = vadd.f32 %v531, %v513
        %v533 = vadd.f32 %v532, %v516
        %v534 = vadd.f32 %v533, %v518
        %v535 = vrot.slane %v534, 4
        %v536 = vadd.f32 %v534, %v535
        %v537 = vrot.slane %v536, 2
        %v538 = vadd.f32 %v536, %v537
        %v539 = vrot.slane %v538, 1
        %v540 = vadd.f32 %v538, %v539
        %v541 = vmul.f32 %v501, %v501
        %v542 = vmul.f32 %v503, %v503
        %v543 = vmul.f32 %v506, %v506
        %v544 = vmul.f32 %v508, %v508
        %v545 = vmul.f32 %v511, %v511
        %v546 = vmul.f32 %v513, %v513
        %v547 = vmul.f32 %v516, %v516
        %v548 = vmul.f32 %v518, %v518
        %v549 = vadd.f32 %v541, %v542
        %v550 = vadd.f32 %v549, %v543
        %v551 = vadd.f32 %v550, %v544
        %v552 = vadd.f32 %v551, %v545
        %v553 = vadd.f32 %v552, %v546
        %v554 = vadd.f32 %v553, %v547
        %v555 = vadd.f32 %v554, %v548
        %v556 = vrot.slane %v555, 4
        %v557 = vadd.f32 %v555, %v556
        %v558 = vrot.slane %v557, 2
        %v559 = vadd.f32 %v557, %v558
        %v560 = vrot.slane %v559, 1
        %v561 = vadd.f32 %v559, %v560
        %vm562 = vcmask 1040384
        %v563 = vsel %vm562, %v540, %v561
        %vm564 = vcmask 1041408
        %v565 = vsel %vm564, %v563, 0.0
        %566 = vst [vmem:[%s382] sm:$0xff] %v565
      $region40: #{basic_block_forward.6} parent=35 // pred_fallthru
        _
      %v567 = vld [vmem:[%s367] sm:$0xff]
      %v568 = vld [vmem:[%s367 + $0x8] sm:$0xff]
      %v569 = vld [vmem:[%s367 + $0x10] sm:$0xff]
      %v570 = vld [vmem:[%s367 + $0x18] sm:$0xff]
      %v571 = vld [vmem:[%s367 + $0x20] sm:$0xff]
      %v572 = vld [vmem:[%s367 + $0x28] sm:$0xff]
      %v573 = vld [vmem:[%s367 + $0x30] sm:$0xff]
      %v574 = vld [vmem:[%s367 + $0x38] sm:$0xff]
      %v575 = vld [vmem:[%s349] sm:$0xf]
      %v576 = vld [vmem:[%s349 + $0x4] sm:$0xf]
      %v577 = vld [vmem:[%s349 + $0x8] sm:$0xf]
      %v578 = vld [vmem:[%s349 + $0xc] sm:$0xf]
      %v579 = vld [vmem:[%s349 + $0x10] sm:$0xf]
      %v580 = vld [vmem:[%s349 + $0x14] sm:$0xf]
      %v581 = vld [vmem:[%s349 + $0x18] sm:$0xf]
      %v582 = vld [vmem:[%s349 + $0x1c] sm:$0xf]
      %v583 = vld [vmem:[%s355] sm:$0xf]
      %v584 = vld [vmem:[%s355 + $0x4] sm:$0xf]
      %v585 = vld [vmem:[%s355 + $0x8] sm:$0xf]
      %v586 = vld [vmem:[%s355 + $0xc] sm:$0xf]
      %v587 = vld [vmem:[%s355 + $0x10] sm:$0xf]
      %v588 = vld [vmem:[%s355 + $0x14] sm:$0xf]
      %v589 = vld [vmem:[%s355 + $0x18] sm:$0xf]
      %v590 = vld [vmem:[%s355 + $0x1c] sm:$0xf]
      %v591 = vld [vmem:[%s355 + $0x20] sm:$0xf]
      %v592 = vld [vmem:[%s355 + $0x24] sm:$0xf]
      %v593 = vld [vmem:[%s355 + $0x28] sm:$0xf]
      %v594 = vld [vmem:[%s355 + $0x2c] sm:$0xf]
      %v595 = vld [vmem:[%s355 + $0x30] sm:$0xf]
      %v596 = vld [vmem:[%s355 + $0x34] sm:$0xf]
      %v597 = vld [vmem:[%s355 + $0x38] sm:$0xf]
      %v598 = vld [vmem:[%s355 + $0x3c] sm:$0xf]
      %v607 = vunpack.c.l.b16 %v575
      %v608 = vunpack.c.l.b16 %v576
      %v609 = vunpack.c.l.b16 %v577
      %v610 = vunpack.c.l.b16 %v578
      %v611 = vunpack.c.l.b16 %v579
      %v612 = vunpack.c.l.b16 %v580
      %v613 = vunpack.c.l.b16 %v581
      %v614 = vunpack.c.l.b16 %v582
      %v615 = vpack.c.b16 %v608, %v607
      %v616 = vpack.c.b16 %v610, %v609
      %v617 = vpack.c.b16 %v612, %v611
      %v618 = vpack.c.b16 %v614, %v613
      %v639 = vunpack.c.l.b16 %v583
      %v640 = vunpack.c.l.b16 %v584
      %v641 = vunpack.c.l.b16 %v585
      %v642 = vunpack.c.l.b16 %v586
      %v643 = vunpack.c.l.b16 %v587
      %v644 = vunpack.c.l.b16 %v588
      %v645 = vunpack.c.l.b16 %v589
      %v646 = vunpack.c.l.b16 %v590
      %v647 = vunpack.c.l.b16 %v591
      %v648 = vunpack.c.l.b16 %v592
      %v649 = vunpack.c.l.b16 %v593
      %v650 = vunpack.c.l.b16 %v594
      %v651 = vunpack.c.l.b16 %v595
      %v652 = vunpack.c.l.b16 %v596
      %v653 = vunpack.c.l.b16 %v597
      %v654 = vunpack.c.l.b16 %v598
      %v655 = vpack.c.b16 %v640, %v639
      %v656 = vpack.c.b16 %v642, %v641
      %v657 = vpack.c.b16 %v644, %v643
      %v658 = vpack.c.b16 %v646, %v645
      %v659 = vpack.c.b16 %v648, %v647
      %v660 = vpack.c.b16 %v650, %v649
      %v661 = vpack.c.b16 %v652, %v651
      %v662 = vpack.c.b16 %v654, %v653
      %671 = vmatpush.bf16.msra.mxu0 %v662
      %672 = vmatpush.bf16.msra.mxu0 %v661
      %673 = vmatpush.bf16.msra.mxu0 %v660
      %674 = vmatpush.bf16.msra.mxu0 %v659
      %675 = vmatpush.bf16.msra.mxu0 %v658
      %676 = vmatpush.bf16.msra.mxu0 %v657
      %677 = vmatpush.bf16.msra.mxu0 %v656
      %678 = vmatpush.bf16.msra.mxu0 %v655
      %679 = vmatmul.bf16.gmra.mxu0 %v615
      %v680 = vpop.f32.mrf.mxu0
      %v681 = vadd.f32 0.0, %v680
      %v682 = vpop.f32.mrf.mxu0
      %v683 = vadd.f32 0.0, %v682
      %684 = vmatmul.bf16.gmra.mxu0 %v616
      %v685 = vpop.f32.mrf.mxu0
      %v686 = vadd.f32 0.0, %v685
      %v687 = vpop.f32.mrf.mxu0
      %v688 = vadd.f32 0.0, %v687
      %689 = vmatmul.bf16.gmra.mxu0 %v617
      %v690 = vpop.f32.mrf.mxu0
      %v691 = vadd.f32 0.0, %v690
      %v692 = vpop.f32.mrf.mxu0
      %v693 = vadd.f32 0.0, %v692
      %694 = vmatmul.bf16.gmra.mxu0 %v618
      %v695 = vpop.f32.mrf.mxu0
      %v696 = vadd.f32 0.0, %v695
      %v697 = vpop.f32.mrf.mxu0
      %v698 = vadd.f32 0.0, %v697
      %699 = vdwg.mxu0
      %v700 = vadd.f32 %v567, %v681
      %v701 = vadd.f32 %v568, %v683
      %v702 = vadd.f32 %v569, %v686
      %v703 = vadd.f32 %v570, %v688
      %v704 = vadd.f32 %v571, %v691
      %v705 = vadd.f32 %v572, %v693
      %v706 = vadd.f32 %v573, %v696
      %v707 = vadd.f32 %v574, %v698
      %708 = vst [vmem:[%s367] sm:$0xff] %v700
      %709 = vst [vmem:[%s367 + $0x8] sm:$0xff] %v701
      %710 = vst [vmem:[%s367 + $0x10] sm:$0xff] %v702
      %711 = vst [vmem:[%s367 + $0x18] sm:$0xff] %v703
      %712 = vst [vmem:[%s367 + $0x20] sm:$0xff] %v704
      %713 = vst [vmem:[%s367 + $0x28] sm:$0xff] %v705
      %714 = vst [vmem:[%s367 + $0x30] sm:$0xff] %v706
      %715 = vst [vmem:[%s367 + $0x38] sm:$0xff] %v707
      // Predicated region
      $region41: #{basic_block_forward.6} parent=35 // pred_check
        %p716 = pneg %p383
      $region42: #{basic_block_forward.6} parent=35 // pred_check_branch
        %718 = sbr.rel (%p716) target = $region44
      $region43: #{basic_block_forward.6} parent=35 // pred_region
        %v719 = vld [vmem:[%s367] sm:$0xff]
        %v720 = vld [vmem:[%s367 + $0x8] sm:$0xff]
        %v721 = vld [vmem:[%s367 + $0x10] sm:$0xff]
        %v722 = vld [vmem:[%s367 + $0x18] sm:$0xff]
        %v723 = vld [vmem:[%s367 + $0x20] sm:$0xff]
        %v724 = vld [vmem:[%s367 + $0x28] sm:$0xff]
        %v725 = vld [vmem:[%s367 + $0x30] sm:$0xff]
        %v726 = vld [vmem:[%s367 + $0x38] sm:$0xff]
        %v727 = vadd.f32 %v719, %v720
        %v728 = vadd.f32 %v727, %v721
        %v729 = vadd.f32 %v728, %v722
        %v730 = vadd.f32 %v729, %v723
        %v731 = vadd.f32 %v730, %v724
        %v732 = vadd.f32 %v731, %v725
        %v733 = vadd.f32 %v732, %v726
        %v734 = vrot.slane %v733, 4
        %v735 = vadd.f32 %v733, %v734
        %v736 = vrot.slane %v735, 2
        %v737 = vadd.f32 %v735, %v736
        %v738 = vrot.slane %v737, 1
        %v739 = vadd.f32 %v737, %v738
        %v740 = vmul.f32 %v719, %v719
        %v741 = vmul.f32 %v720, %v720
        %v742 = vmul.f32 %v721, %v721
        %v743 = vmul.f32 %v722, %v722
        %v744 = vmul.f32 %v723, %v723
        %v745 = vmul.f32 %v724, %v724
        %v746 = vmul.f32 %v725, %v725
        %v747 = vmul.f32 %v726, %v726
        %v748 = vadd.f32 %v740, %v741
        %v749 = vadd.f32 %v748, %v742
        %v750 = vadd.f32 %v749, %v743
        %v751 = vadd.f32 %v750, %v744
        %v752 = vadd.f32 %v751, %v745
        %v753 = vadd.f32 %v752, %v746
        %v754 = vadd.f32 %v753, %v747
        %v755 = vrot.slane %v754, 4
        %v756 = vadd.f32 %v754, %v755
        %v757 = vrot.slane %v756, 2
        %v758 = vadd.f32 %v756, %v757
        %v759 = vrot.slane %v758, 1
        %v760 = vadd.f32 %v758, %v759
        %vm761 = vcmask 1040384
        %v762 = vsel %vm761, %v739, %v760
        %vm763 = vcmask 1041408
        %v764 = vsel %vm763, %v762, 0.0
        %765 = vst [vmem:[%s372] sm:$0xff] %v764
      $region44: #{basic_block_forward.6} parent=35 // pred_fallthru
        _
      %s766 = smul.u32 8, %s23
      %p767 = scmp.lt.s32.totalorder %s766, 15
      %s768 = scalar_select %p767, %s766, 15
      %s769 = smul.addr %s768, 8
      %s770 = scalar_lea.vmem %s4, %s769
      %p771 = scmp.lt.s32.totalorder %s23, 1
      %s772 = scalar_select %p771, %s23, 1
      %s773 = smul.addr %s772, 8
      %s774 = scalar_lea.vmem %s5, %s773
      %s775 = smul.u32 8, %s23
      %p776 = scmp.lt.s32.totalorder %s775, 15
      %s777 = scalar_select %p776, %s775, 15
      %s778 = smul.addr %s777, 8
      %s779 = scalar_lea.vmem %s6, %s778
      %p780 = scmp.lt.s32.totalorder %s23, 1
      %s781 = scalar_select %p780, %s23, 1
      %s782 = smul.addr %s781, 8
      %s783 = scalar_lea.vmem %s7, %s782
      // Predicated region
      $region45: #{basic_block_forward.6} parent=35 // pred_check
        %p784 = pneg %p150
      $region46: #{basic_block_forward.6} parent=35 // pred_check_branch
        %786 = sbr.rel (%p784) target = $region48
      $region47: #{basic_block_forward.6} parent=35 // pred_region
        %s787 = smul.u32 8, %s23
      $region48: #{basic_block_forward.6} parent=35 // pred_fallthru
        _
      // Predicated region
      $region49: #{basic_block_forward.6} parent=35 // pred_check
        %p788 = pneg %p176
      $region50: #{basic_block_forward.6} parent=35 // pred_check_branch
        %790 = sbr.rel (%p788) target = $region52
      $region51: #{basic_block_forward.6} parent=35 // pred_region
        _
      $region52: #{basic_block_forward.6} parent=35 // pred_fallthru
        _
      // Predicated region
      $region53: #{basic_block_forward.6} parent=35 // pred_check
        %p791 = pneg %p202
      $region54: #{basic_block_forward.6} parent=35 // pred_check_branch
        %793 = sbr.rel (%p791) target = $region56
      $region55: #{basic_block_forward.6} parent=35 // pred_region
        %s794 = smul.u32 8, %s23
      $region56: #{basic_block_forward.6} parent=35 // pred_fallthru
        _
      // Predicated region
      $region57: #{basic_block_forward.6} parent=35 // pred_check
        %p795 = pneg %p228
      $region58: #{basic_block_forward.6} parent=35 // pred_check_branch
        %797 = sbr.rel (%p795) target = $region60
      $region59: #{basic_block_forward.6} parent=35 // pred_region
        _
      $region60: #{basic_block_forward.6} parent=35 // pred_fallthru
        _
    $region36: #{basic_block_forward.6} parent=5 // pred_fallthru
      _
    %p798 = scmp.le.s32.totalorder 2, %s14
    // Predicated region
    $region61: #{basic_block_forward.6} parent=5 // pred_check
      %p799 = pneg %p798
    $region62: #{basic_block_forward.6} parent=5 // pred_check_branch
      %801 = sbr.rel (%p799) target = $region64
    $region63: #{basic_block_forward.6} parent=5 // pred_region
      %s802 = ssub.s32 %s14, 2
      // Predicated region
      $region65: #{basic_block_forward.6} parent=63 // pred_check
        %p803 = pneg %p156
      $region66: #{basic_block_forward.6} parent=63 // pred_check_branch
        %805 = sbr.rel (%p803) target = $region68
      $region67: #{basic_block_forward.6} parent=63 // pred_region
        %s806 = smul.u32 8, %s25
        %p807 = scmp.lt.s32.totalorder %s806, 15
        %s808 = scalar_select %p807, %s806, 15
        %s809 = smul.addr %s808, 8
        %s810 = scalar_lea.vmem %s4, %s809
      $region68: #{basic_block_forward.6} parent=63 // pred_fallthru
        _
      // Predicated region
      $region69: #{basic_block_forward.6} parent=63 // pred_check
        %p811 = pneg %p182
      $region70: #{basic_block_forward.6} parent=63 // pred_check_branch
        %813 = sbr.rel (%p811) target = $region72
      $region71: #{basic_block_forward.6} parent=63 // pred_region
        %p814 = scmp.lt.s32.totalorder %s25, 1
        %s815 = scalar_select %p814, %s25, 1
        %s816 = smul.addr %s815, 8
        %s817 = scalar_lea.vmem %s5, %s816
      $region72: #{basic_block_forward.6} parent=63 // pred_fallthru
        _
      // Predicated region
      $region73: #{basic_block_forward.6} parent=63 // pred_check
        %p818 = pneg %p208
      $region74: #{basic_block_forward.6} parent=63 // pred_check_branch
        %820 = sbr.rel (%p818) target = $region76
      $region75: #{basic_block_forward.6} parent=63 // pred_region
        %s821 = smul.u32 8, %s25
        %p822 = scmp.lt.s32.totalorder %s821, 15
        %s823 = scalar_select %p822, %s821, 15
        %s824 = smul.addr %s823, 8
        %s825 = scalar_lea.vmem %s6, %s824
      $region76: #{basic_block_forward.6} parent=63 // pred_fallthru
        _
      // Predicated region
      $region77: #{basic_block_forward.6} parent=63 // pred_check
        %p826 = pneg %p234
      $region78: #{basic_block_forward.6} parent=63 // pred_check_branch
        %828 = sbr.rel (%p826) target = $region80
      $region79: #{basic_block_forward.6} parent=63 // pred_region
        %p829 = scmp.lt.s32.totalorder %s25, 1
        %s830 = scalar_select %p829, %s25, 1
        %s831 = smul.addr %s830, 8
        %s832 = scalar_lea.vmem %s7, %s831
      $region80: #{basic_block_forward.6} parent=63 // pred_fallthru
        _
    $region64: #{basic_block_forward.6} parent=5 // pred_fallthru
      _
  $region6: #{basic_block_forward.6} parent=0 // loop_footer
    %s18 = sadd.s32 1, %s14
  $region7: #{basic_block_forward.6} parent=0 // loop_footer_branch
    %13 = sbr.rel target = $region3
  $region8: #{basic_block_forward.6} parent=0 // loop_exit
    _

</llo_original>
